<compile_context>
chip_gen: v7x
topology: tpu7x:2x2x1
jax: 0.10.0
libtpu: 0.0.40
codegen_flags: <defaults>
</compile_context>

<pallas_src>
import math
import functools

import jax
import jax.numpy as jnp
from jax.experimental import pallas as pl
from jax.experimental.pallas import tpu as pltpu

LN_EPS = 1e-12          # BERT LayerNorm epsilon
MASK_VALUE = -10000.0   # HF BERT additive-mask fill value
CLS_PAD = 128           # lane-dense classifier output width

# packed per-layer (1, H) vector rows inside the (L, 8, H) tensor
_ROW_BO, _ROW_LN1G, _ROW_LN1B, _ROW_B2, _ROW_LN2G, _ROW_LN2B = range(6)


# ----------------------------- in-kernel helpers -----------------------------

def _layernorm(x, g, b):
    mu = jnp.mean(x, axis=-1, keepdims=True)
    var = jnp.mean(jnp.square(x - mu), axis=-1, keepdims=True)
    return (x - mu) * jax.lax.rsqrt(var + LN_EPS) * g + b


def _gelu(x):
    # TODO(synk): tanh-approx GELU; HF BERT default "gelu" is the exact erf form.
    c = math.sqrt(2.0 / math.pi)
    return 0.5 * x * (1.0 + jnp.tanh(c * (x + 0.044715 * x * x * x)))


def _vmem_limit_bytes():
    """Generation-aware scoped-VMEM budget (v5e/v6e: 128 MiB, v7x: 64 MiB)."""
    try:
        cap = pltpu.get_tpu_info().vmem_capacity_bytes
    except Exception:
        cap = 64 * 1024 * 1024  # conservative fallback (v7x per-TC)
    return min(int(cap * 3 // 4), 96 * 1024 * 1024)


# --------------------------------- kernel -----------------------------------

def encoder_stack_kernel(num_heads,
                         emb_ref, mask_ref, embln_ref,
                         wqkv_ref, bqkv_ref, wo_ref,
                         wi_ref, bi_ref, w2_ref, vec_ref,
                         wp_ref, bp_ref, wc_ref, bc_ref,
                         out_ref, x_sc):
    """One (batch-chunk, layer) grid step of the BERT encoder.

    x_sc (VMEM scratch, f32, shape (Bc*S, H)) carries the residual stream
    across the layer axis.  INVARIANT: the layer axis is the innermost
    ("arbitrary") grid axis and layer==0 re-initializes x_sc per batch chunk;
    do not reorder the grid.
    """
    layer = pl.program_id(1)
    Bc, S, H = emb_ref.shape
    nh = num_heads
    hd = H // nh
    N = Bc * S

    @pl.when(layer == 0)
    def _():
        # Fused embedding LayerNorm — initializes the resident residual stream.
        e = emb_ref[...].reshape(N, H)
        x_sc[...] = _layernorm(e, embln_ref[0:1, :], embln_ref[1:2, :])

    x = x_sc[...]                                   # (Bc*S, H) f32
    xb = x.astype(jnp.bfloat16)

    # ---- fused QKV projection: one bf16 matmul with N = 3H ----
    # (1/sqrt(hd) is already folded into Wq/bq at parameter setup.)
    qkv = jnp.dot(xb, wqkv_ref[...],
                  preferred_element_type=jnp.float32) + bqkv_ref[...]   # (N, 3H)
    q = qkv[:, 0 * H:1 * H].reshape(Bc, S, nh, hd)
    k = qkv[:, 1 * H:2 * H].reshape(Bc, S, nh, hd)
    v = qkv[:, 2 * H:3 * H].reshape(Bc, S, nh, hd)

    # ---- (batch*head)-batched scaled-dot-product attention ----
    # TODO(synk): replace the swapaxes head relayouts with pltpu.einshape once
    # grouped-dim equations are relied upon; for large S, chunk heads / q-rows
    # flash-style to bound the (B*nh, S, S) live intermediates.
    qh = jnp.swapaxes(q, 1, 2).reshape(Bc * nh, S, hd).astype(jnp.bfloat16)
    kh = jnp.swapaxes(k, 1, 2).reshape(Bc * nh, S, hd).astype(jnp.bfloat16)
    vh = jnp.swapaxes(v, 1, 2).reshape(Bc * nh, S, hd).astype(jnp.bfloat16)

    scores = jnp.einsum('hqd,hkd->hqk', qh, kh,
                        preferred_element_type=jnp.float32)             # (Bc*nh,S,S)
    maskb = jnp.broadcast_to(mask_ref[...][:, None, :, :],
                             (Bc, nh, 1, S)).reshape(Bc * nh, 1, S)
    scores = scores + maskb
    scores = scores - jnp.max(scores, axis=-1, keepdims=True)
    p = jnp.exp(scores)
    p = p * pl.reciprocal(jnp.sum(p, axis=-1, keepdims=True), approx=True)

    ctx = jnp.einsum('hqk,hkd->hqd', p.astype(jnp.bfloat16), vh,
                     preferred_element_type=jnp.float32)                # (Bc*nh,S,hd)
    ctx = jnp.swapaxes(ctx.reshape(Bc, nh, S, hd), 1, 2).reshape(N, H)

    vec = vec_ref[...]                              # (8, H) packed per-layer vectors
    attn = jnp.dot(ctx.astype(jnp.bfloat16), wo_ref[...],
                   preferred_element_type=jnp.float32) + vec[_ROW_BO:_ROW_BO + 1, :]

    h1 = _layernorm(x + attn,
                    vec[_ROW_LN1G:_ROW_LN1G + 1, :],
                    vec[_ROW_LN1B:_ROW_LN1B + 1, :])

    # ---- feed-forward ----
    # TODO(synk): for BERT-large on v7x, tile Wi/W2 over the intermediate dim.
    inter = _gelu(jnp.dot(h1.astype(jnp.bfloat16), wi_ref[...],
                          preferred_element_type=jnp.float32) + bi_ref[...])
    ffn = jnp.dot(inter.astype(jnp.bfloat16), w2_ref[...],
                  preferred_element_type=jnp.float32) + vec[_ROW_B2:_ROW_B2 + 1, :]
    h2 = _layernorm(h1 + ffn,
                    vec[_ROW_LN2G:_ROW_LN2G + 1, :],
                    vec[_ROW_LN2B:_ROW_LN2B + 1, :])

    x_sc[...] = h2

    @pl.when(layer == pl.num_programs(1) - 1)
    def _():
        # Fused pooler (tanh dense on [CLS]) + classifier; dropout is identity
        # at inference.  Only (Bc, CLS_PAD) lane-dense logits go back to HBM —
        # the full (B, S, H) sequence output is never written.
        cls = h2.reshape(Bc, S, H)[:, 0, :]                             # (Bc, H)
        pooled = jnp.tanh(jnp.dot(cls.astype(jnp.bfloat16), wp_ref[...],
                                  preferred_element_type=jnp.float32) + bp_ref[...])
        out_ref[...] = jnp.dot(pooled.astype(jnp.bfloat16), wc_ref[...],
                               preferred_element_type=jnp.float32) + bc_ref[...]


# ------------------------------ pallas wrapper -------------------------------

def run_encoder_stack(emb, add_mask, emb_ln, stack,
                      pool_w, pool_b, cls_w, cls_b,
                      num_heads, batch_chunks=1):
    B, S, H = emb.shape
    L = stack["wqkv"].shape[0]
    H3 = stack["wqkv"].shape[-1]
    I = stack["wi"].shape[-1]
    npad = cls_w.shape[-1]
    assert B % batch_chunks == 0, "batch_chunks must divide batch"
    Bc = B // batch_chunks

    def act(shape):     # per-batch-chunk activation block
        return pl.BlockSpec(shape, lambda c, l: (c, 0, 0))

    def rep(shape):     # replicated param (same block every step -> single DMA)
        n = len(shape)
        return pl.BlockSpec(shape, lambda c, l: (0,) * n)

    def wspec(d1, d2):  # per-layer weight slice from the stacked tensor
        return pl.BlockSpec((pl.Squeezed(), d1, d2), lambda c, l: (l, 0, 0))

    in_specs = [
        act((Bc, S, H)),        # summed embeddings
        act((Bc, 1, S)),        # additive attention mask
        rep((2, H)),            # embedding LN gamma/beta (packed)
        wspec(H, H3),           # fused Wqkv
        wspec(1, H3),           # fused bqkv
        wspec(H, H),            # Wo
        wspec(H, I),            # Wi
        wspec(1, I),            # bi
        wspec(I, H),            # W2
        wspec(8, H),            # packed (bo, ln1g, ln1b, b2, ln2g, ln2b, 0, 0)
        rep((H, H)),            # pooler W
        rep((1, H)),            # pooler b
        rep((H, npad)),         # classifier W (128-lane padded)
        rep((1, npad)),         # classifier b (128-lane padded)
    ]

    return pl.pallas_call(
        functools.partial(encoder_stack_kernel, num_heads),
        out_shape=jax.ShapeDtypeStruct((B, npad), jnp.float32),
        grid=(batch_chunks, L),
        in_specs=in_specs,
        out_specs=pl.BlockSpec((Bc, npad), lambda c, l: (c, 0)),
        scratch_shapes=[pltpu.VMEM((Bc * S, H), jnp.float32)],
        compiler_params=pltpu.CompilerParams(
            dimension_semantics=("parallel", "arbitrary"),
            vmem_limit_bytes=_vmem_limit_bytes()),
    )(emb, add_mask, emb_ln,
      stack["wqkv"], stack["bqkv"], stack["wo"],
      stack["wi"], stack["bi"], stack["w2"], stack["vec"],
      pool_w, pool_b, cls_w, cls_b)


# --------------------------------- model --------------------------------------

class ASCCModelPallas:
    """Tiny deterministic BERT + classifier matching ASCCModel.forward semantics."""

    def __init__(self, key, *, vocab_size=100, hidden=32, num_layers=2,
                 num_heads=2, intermediate=64, max_pos=32, type_vocab=2,
                 num_labels=3, batch_chunks=1):
        self.hidden = hidden
        self.num_heads = num_heads
        self.num_labels = num_labels
        # batch_chunks=1 for v5e/v6e (1 TC); use 2 on v7x so the "parallel"
        # grid axis feeds both TensorCores (must divide batch).
        self.batch_chunks = batch_chunks

        f32 = jnp.float32
        bf16 = jnp.bfloat16
        hd = hidden // num_heads
        scale = 1.0 / math.sqrt(hd)

        def nrm(k, shape):
            return 0.02 * jax.random.normal(k, shape, dtype=f32)

        keys = iter(jax.random.split(key, 64))
        p = {}
        p["word_emb"] = nrm(next(keys), (vocab_size, hidden))
        p["pos_emb"] = nrm(next(keys), (max_pos, hidden))
        p["type_emb"] = nrm(next(keys), (type_vocab, hidden))
        p["emb_ln"] = jnp.stack([jnp.ones((hidden,), f32),
                                 jnp.zeros((hidden,), f32)])            # (2, H)

        wqkv_l, bqkv_l, wo_l, wi_l, bi_l, w2_l, vec_l = [], [], [], [], [], [], []
        for _ in range(num_layers):
            wq = nrm(next(keys), (hidden, hidden))
            wk = nrm(next(keys), (hidden, hidden))
            wv = nrm(next(keys), (hidden, hidden))
            bq = jnp.zeros((hidden,), f32)
            bk = jnp.zeros((hidden,), f32)
            bv = jnp.zeros((hidden,), f32)
            # 1/sqrt(hd) folded into Wq / bq -> no per-score scaling in-kernel.
            wqkv_l.append(jnp.concatenate([wq * scale, wk, wv], axis=1).astype(bf16))
            bqkv_l.append(jnp.concatenate([bq * scale, bk, bv])[None, :])
            wo_l.append(nrm(next(keys), (hidden, hidden)).astype(bf16))
            wi_l.append(nrm(next(keys), (hidden, intermediate)).astype(bf16))
            bi_l.append(jnp.zeros((1, intermediate), f32))
            w2_l.append(nrm(next(keys), (intermediate, hidden)).astype(bf16))
            # packed per-layer vectors: bo, ln1g, ln1b, b2, ln2g, ln2b, pad, pad
            vec_l.append(jnp.stack([
                jnp.zeros((hidden,), f32),   # bo
                jnp.ones((hidden,), f32),    # ln1 gamma
                jnp.zeros((hidden,), f32),   # ln1 beta
                jnp.zeros((hidden,), f32),   # b2
                jnp.ones((hidden,), f32),    # ln2 gamma
                jnp.zeros((hidden,), f32),   # ln2 beta
                jnp.zeros((hidden,), f32),
                jnp.zeros((hidden,), f32),
            ]))

        p["stack"] = dict(
            wqkv=jnp.stack(wqkv_l),          # (L, H, 3H) bf16
            bqkv=jnp.stack(bqkv_l),          # (L, 1, 3H) f32
            wo=jnp.stack(wo_l),              # (L, H, H)  bf16
            wi=jnp.stack(wi_l),              # (L, H, I)  bf16
            bi=jnp.stack(bi_l),              # (L, 1, I)  f32
            w2=jnp.stack(w2_l),              # (L, I, H)  bf16
            vec=jnp.stack(vec_l),            # (L, 8, H)  f32
        )

        p["pool_w"] = nrm(next(keys), (hidden, hidden)).astype(bf16)
        p["pool_b"] = jnp.zeros((1, hidden), f32)
        # classifier padded to CLS_PAD output lanes (zeros beyond num_labels)
        cls_w_real = nrm(next(keys), (hidden, num_labels))
        p["cls_w"] = (jnp.zeros((hidden, CLS_PAD), f32)
                      .at[:, :num_labels].set(cls_w_real).astype(bf16))
        p["cls_b"] = jnp.zeros((1, CLS_PAD), f32)
        self.params = p

    def __call__(self, input_ids, attention_mask, token_type_ids):
        p = self.params
        B, S = input_ids.shape

        # --- embeddings (gather = glue) ---
        emb = (jnp.take(p["word_emb"], input_ids, axis=0)
               + p["pos_emb"][None, :S, :]
               + jnp.take(p["type_emb"], token_type_ids, axis=0)).astype(jnp.float32)

        # --- HF-style additive attention mask, shaped (B, 1, S) ---
        add_mask = ((1.0 - attention_mask.astype(jnp.float32)) * MASK_VALUE)[:, None, :]

        # --- encoder + pooler + classifier in one pallas_call ---
        logits_padded = run_encoder_stack(
            emb, add_mask, p["emb_ln"], p["stack"],
            p["pool_w"], p["pool_b"], p["cls_w"], p["cls_b"],
            self.num_heads, batch_chunks=self.batch_chunks)
        logits = logits_padded[:, :self.num_labels]
        # ASCCModel.forward returns (clean_logits, clean_logits); everything
        # after the early return in the PyTorch source is dead code.
        return logits, logits


# ---------------------------------- main ---------------------------------------

if __name__ == "__main__":
    key = jax.random.PRNGKey(0)
    k_model, k_ids = jax.random.split(key)

    batch, seq, vocab = 2, 8, 100
    model = ASCCModelPallas(k_model, vocab_size=vocab, hidden=32, num_layers=2,
                            num_heads=2, intermediate=64, max_pos=32,
                            type_vocab=2, num_labels=3, batch_chunks=1)

    input_ids = jax.random.randint(k_ids, (batch, seq), 0, vocab, dtype=jnp.int32)
    attention_mask = jnp.ones((batch, seq), dtype=jnp.int32)
    token_type_ids = jnp.zeros((batch, seq), dtype=jnp.int32)

    clean_logits, adv_logits = model(input_ids, attention_mask, token_type_ids)
    jax.block_until_ready((clean_logits, adv_logits))

    assert clean_logits.shape == (batch, 3)
    assert jnp.all(jnp.isfinite(clean_logits))
    print("KERNEL_OK")
</pallas_src>

<mosaic_0001>
module attributes {stable_mosaic.version = 11 : i64} {
  func.func @encoder_stack_kernel(%arg0: i32, %arg1: i32, %arg2: memref<2x8x32xf32, #tpu.memory_space<vmem>>, %arg3: memref<2x1x8xf32, #tpu.memory_space<vmem>>, %arg4: memref<2x32xf32, #tpu.memory_space<vmem>>, %arg5: memref<1x32x96xbf16, #tpu.memory_space<vmem>>, %arg6: memref<1x1x96xf32, #tpu.memory_space<vmem>>, %arg7: memref<1x32x32xbf16, #tpu.memory_space<vmem>>, %arg8: memref<1x32x64xbf16, #tpu.memory_space<vmem>>, %arg9: memref<1x1x64xf32, #tpu.memory_space<vmem>>, %arg10: memref<1x64x32xbf16, #tpu.memory_space<vmem>>, %arg11: memref<1x8x32xf32, #tpu.memory_space<vmem>>, %arg12: memref<32x32xbf16, #tpu.memory_space<vmem>>, %arg13: memref<1x32xf32, #tpu.memory_space<vmem>>, %arg14: memref<32x128xbf16, #tpu.memory_space<vmem>>, %arg15: memref<1x128xf32, #tpu.memory_space<vmem>>, %arg16: memref<2x128xf32, #tpu.memory_space<vmem>>, %arg17: memref<16x32xf32, #tpu.memory_space<vmem>>) attributes {dimension_semantics = [#tpu.dimension_semantics<parallel>, #tpu.dimension_semantics<arbitrary>], iteration_bounds = array<i64: 1, 2>, scalar_prefetch = 0 : i64, scratch_operands = 1 : i64, tpu.core_type = #tpu.core_type<tc>, window_params = [{transform_indices = @transform_0, window_bounds = array<i64: 2, 8, 32>}, {transform_indices = @transform_1, window_bounds = array<i64: 2, 1, 8>}, {pipeline_mode = #tpu.pipeline_mode<synchronous>, transform_indices = @transform_2, window_bounds = array<i64: 2, 32>}, {transform_indices = @transform_3, window_bounds = array<i64: 1, 32, 96>}, {transform_indices = @transform_4, window_bounds = array<i64: 1, 1, 96>}, {transform_indices = @transform_5, window_bounds = array<i64: 1, 32, 32>}, {transform_indices = @transform_6, window_bounds = array<i64: 1, 32, 64>}, {transform_indices = @transform_7, window_bounds = array<i64: 1, 1, 64>}, {transform_indices = @transform_8, window_bounds = array<i64: 1, 64, 32>}, {transform_indices = @transform_9, window_bounds = array<i64: 1, 8, 32>}, {pipeline_mode = #tpu.pipeline_mode<synchronous>, transform_indices = @transform_10, window_bounds = array<i64: 32, 32>}, {pipeline_mode = #tpu.pipeline_mode<synchronous>, transform_indices = @transform_11, window_bounds = array<i64: 1, 32>}, {pipeline_mode = #tpu.pipeline_mode<synchronous>, transform_indices = @transform_12, window_bounds = array<i64: 32, 128>}, {pipeline_mode = #tpu.pipeline_mode<synchronous>, transform_indices = @transform_13, window_bounds = array<i64: 1, 128>}, {transform_indices = @transform_14, window_bounds = array<i64: 2, 128>}]} {
    %c0_i32 = arith.constant 0 : i32
    %0 = arith.cmpi eq, %arg1, %c0_i32 : i32
    %1 = arith.extui %0 : i1 to i32
    %c0_i32_0 = arith.constant 0 : i32
    %2 = arith.cmpi ne, %1, %c0_i32_0 : i32
    scf.if %2 {
      %c0_50 = arith.constant 0 : index
      %c0_51 = arith.constant 0 : index
      %c0_52 = arith.constant 0 : index
      %141 = vector.load %arg2[%c0_50, %c0_51, %c0_52] : memref<2x8x32xf32, #tpu.memory_space<vmem>>, vector<2x8x32xf32>
      %142 = vector.shape_cast %141 : vector<2x8x32xf32> to vector<16x32xf32>
      %c0_53 = arith.constant 0 : index
      %c0_54 = arith.constant 0 : index
      %143 = vector.load %arg4[%c0_53, %c0_54] : memref<2x32xf32, #tpu.memory_space<vmem>>, vector<1x32xf32>
      %c1 = arith.constant 1 : index
      %c0_55 = arith.constant 0 : index
      %144 = vector.load %arg4[%c1, %c0_55] : memref<2x32xf32, #tpu.memory_space<vmem>>, vector<1x32xf32>
      %cst_56 = arith.constant dense<0.000000e+00> : vector<16xf32>
      %145 = vector.multi_reduction <add>, %142, %cst_56 [1] : vector<16x32xf32> to vector<16xf32>
      %146 = vector.shape_cast %145 : vector<16xf32> to vector<16x1xf32>
      %cst_57 = arith.constant 3.200000e+01 : f32
      %147 = vector.broadcast %cst_57 : f32 to vector<16x1xf32>
      %148 = arith.divf %146, %147 : vector<16x1xf32>
      %149 = vector.broadcast %148 : vector<16x1xf32> to vector<16x32xf32>
      %150 = arith.subf %142, %149 : vector<16x32xf32>
      %151 = arith.mulf %150, %150 : vector<16x32xf32>
      %cst_58 = arith.constant dense<0.000000e+00> : vector<16xf32>
      %152 = vector.multi_reduction <add>, %151, %cst_58 [1] : vector<16x32xf32> to vector<16xf32>
      %153 = vector.shape_cast %152 : vector<16xf32> to vector<16x1xf32>
      %cst_59 = arith.constant 3.200000e+01 : f32
      %154 = vector.broadcast %cst_59 : f32 to vector<16x1xf32>
      %155 = arith.divf %153, %154 : vector<16x1xf32>
      %156 = vector.broadcast %148 : vector<16x1xf32> to vector<16x32xf32>
      %157 = arith.subf %142, %156 : vector<16x32xf32>
      %cst_60 = arith.constant 9.99999996E-13 : f32
      %158 = vector.broadcast %cst_60 : f32 to vector<16x1xf32>
      %159 = arith.addf %155, %158 : vector<16x1xf32>
      %160 = math.rsqrt %159 : vector<16x1xf32>
      %161 = vector.broadcast %160 : vector<16x1xf32> to vector<16x32xf32>
      %162 = arith.mulf %157, %161 : vector<16x32xf32>
      %163 = vector.broadcast %143 : vector<1x32xf32> to vector<16x32xf32>
      %164 = arith.mulf %162, %163 : vector<16x32xf32>
      %165 = vector.broadcast %144 : vector<1x32xf32> to vector<16x32xf32>
      %166 = arith.addf %164, %165 : vector<16x32xf32>
      %c0_61 = arith.constant 0 : index
      %c0_62 = arith.constant 0 : index
      %167 = vector.load %arg17[%c0_61, %c0_62] : memref<16x32xf32, #tpu.memory_space<vmem>>, vector<16x32xf32>
      tpu.vector_store %arg17[%c0_61, %c0_62], %166 {strides = array<i32>} : memref<16x32xf32, #tpu.memory_space<vmem>>, vector<16x32xf32>,
    } else {
    }
    %c0 = arith.constant 0 : index
    %c0_1 = arith.constant 0 : index
    %3 = vector.load %arg17[%c0, %c0_1] : memref<16x32xf32, #tpu.memory_space<vmem>>, vector<16x32xf32>
    %4 = arith.truncf %3 : vector<16x32xf32> to vector<16x32xbf16>
    %c0_2 = arith.constant 0 : index
    %c0_3 = arith.constant 0 : index
    %c0_4 = arith.constant 0 : index
    %5 = vector.load %arg5[%c0_2, %c0_3, %c0_4] : memref<1x32x96xbf16, #tpu.memory_space<vmem>>, vector<1x32x96xbf16>
    %6 = vector.shape_cast %5 : vector<1x32x96xbf16> to vector<32x96xbf16>
    %cst = arith.constant dense<0.000000e+00> : vector<16x96xf32>
    %7 = tpu.matmul %4, %6, %cst {dimension_numbers = #tpu.dot_dimension_numbers<[1], [0], [0], [1], [0, 0, 1, 1], [], []>} : vector<16x32xbf16>, vector<32x96xbf16>, vector<16x96xf32> -> vector<16x96xf32>
    %c0_5 = arith.constant 0 : index
    %c0_6 = arith.constant 0 : index
    %c0_7 = arith.constant 0 : index
    %8 = vector.load %arg6[%c0_5, %c0_6, %c0_7] : memref<1x1x96xf32, #tpu.memory_space<vmem>>, vector<1x1x96xf32>
    %9 = vector.shape_cast %8 : vector<1x1x96xf32> to vector<1x96xf32>
    %10 = vector.broadcast %9 : vector<1x96xf32> to vector<16x96xf32>
    %11 = arith.addf %7, %10 : vector<16x96xf32>
    %12 = vector.extract_strided_slice %11 {offsets = [0, 0], sizes = [16, 32], strides = [1, 1]} : vector<16x96xf32> to vector<16x32xf32>
    %13 = vector.shape_cast %12 : vector<16x32xf32> to vector<2x8x2x16xf32>
    %14 = vector.extract_strided_slice %11 {offsets = [0, 32], sizes = [16, 32], strides = [1, 1]} : vector<16x96xf32> to vector<16x32xf32>
    %15 = vector.shape_cast %14 : vector<16x32xf32> to vector<2x8x2x16xf32>
    %16 = vector.extract_strided_slice %11 {offsets = [0, 64], sizes = [16, 32], strides = [1, 1]} : vector<16x96xf32> to vector<16x32xf32>
    %17 = vector.shape_cast %16 : vector<16x32xf32> to vector<2x8x2x16xf32>
    %18 = tpu.transpose %13, [0, 2, 1, 3] : vector<2x8x2x16xf32> -> vector<2x2x8x16xf32>
    %19 = vector.shape_cast %18 : vector<2x2x8x16xf32> to vector<4x8x16xf32>
    %20 = arith.truncf %19 : vector<4x8x16xf32> to vector<4x8x16xbf16>
    %21 = tpu.transpose %15, [0, 2, 1, 3] : vector<2x8x2x16xf32> -> vector<2x2x8x16xf32>
    %22 = vector.shape_cast %21 : vector<2x2x8x16xf32> to vector<4x8x16xf32>
    %23 = arith.truncf %22 : vector<4x8x16xf32> to vector<4x8x16xbf16>
    %24 = tpu.transpose %17, [0, 2, 1, 3] : vector<2x8x2x16xf32> -> vector<2x2x8x16xf32>
    %25 = vector.shape_cast %24 : vector<2x2x8x16xf32> to vector<4x8x16xf32>
    %26 = arith.truncf %25 : vector<4x8x16xf32> to vector<4x8x16xbf16>
    "tpu.trace_start"() <{level = 10 : i32, message = "hqd,hkd->hqk"}> : () -> ()
    %cst_8 = arith.constant dense<0.000000e+00> : vector<4x8x8xf32>
    %27 = tpu.matmul %20, %23, %cst_8 {dimension_numbers = #tpu.dot_dimension_numbers<[2], [2], [1], [1], [0, 0, 0, 1, 1, 1], [0], [0]>} : vector<4x8x16xbf16>, vector<4x8x16xbf16>, vector<4x8x8xf32> -> vector<4x8x8xf32>
    "tpu.trace_stop"() : () -> ()
    %c0_9 = arith.constant 0 : index
    %c0_10 = arith.constant 0 : index
    %c0_11 = arith.constant 0 : index
    %28 = vector.load %arg3[%c0_9, %c0_10, %c0_11] : memref<2x1x8xf32, #tpu.memory_space<vmem>>, vector<2x1x8xf32>
    %29 = vector.shape_cast %28 : vector<2x1x8xf32> to vector<2x1x1x8xf32>
    %30 = vector.shape_cast %29 : vector<2x1x1x8xf32> to vector<2x1x1x8xf32>
    %31 = vector.broadcast %30 : vector<2x1x1x8xf32> to vector<2x2x1x8xf32>
    %32 = vector.shape_cast %31 : vector<2x2x1x8xf32> to vector<4x1x8xf32>
    %33 = vector.broadcast %32 : vector<4x1x8xf32> to vector<4x8x8xf32>
    %34 = arith.addf %27, %33 : vector<4x8x8xf32>
    %cst_12 = arith.constant dense<0xFF800000> : vector<4x8xf32>
    %35 = vector.multi_reduction <maximumf>, %34, %cst_12 [2] : vector<4x8x8xf32> to vector<4x8xf32>
    %36 = vector.shape_cast %35 : vector<4x8xf32> to vector<4x8x1xf32>
    %37 = vector.broadcast %36 : vector<4x8x1xf32> to vector<4x8x8xf32>
    %38 = arith.subf %34, %37 : vector<4x8x8xf32>
    %39 = math.exp %38 : vector<4x8x8xf32>
    %cst_13 = arith.constant dense<0.000000e+00> : vector<4x8xf32>
    %40 = vector.multi_reduction <add>, %39, %cst_13 [2] : vector<4x8x8xf32> to vector<4x8xf32>
    %41 = vector.shape_cast %40 : vector<4x8xf32> to vector<4x8x1xf32>
    %42 = tpu.reciprocal %41 {approx = true} : vector<4x8x1xf32> -> vector<4x8x1xf32>
    %43 = vector.broadcast %42 : vector<4x8x1xf32> to vector<4x8x8xf32>
    %44 = arith.mulf %39, %43 : vector<4x8x8xf32>
    %45 = arith.truncf %44 : vector<4x8x8xf32> to vector<4x8x8xbf16>
    "tpu.trace_start"() <{level = 10 : i32, message = "hqk,hkd->hqd"}> : () -> ()
    %cst_14 = arith.constant dense<0.000000e+00> : vector<4x8x16xf32>
    %46 = tpu.matmul %45, %26, %cst_14 {dimension_numbers = #tpu.dot_dimension_numbers<[2], [1], [1], [2], [0, 0, 0, 1, 1, 2], [0], [0]>} : vector<4x8x8xbf16>, vector<4x8x16xbf16>, vector<4x8x16xf32> -> vector<4x8x16xf32>
    "tpu.trace_stop"() : () -> ()
    %47 = vector.shape_cast %46 : vector<4x8x16xf32> to vector<2x2x8x16xf32>
    %48 = tpu.transpose %47, [0, 2, 1, 3] : vector<2x2x8x16xf32> -> vector<2x8x2x16xf32>
    %49 = vector.shape_cast %48 : vector<2x8x2x16xf32> to vector<16x32xf32>
    %c0_15 = arith.constant 0 : index
    %c0_16 = arith.constant 0 : index
    %c0_17 = arith.constant 0 : index
    %50 = vector.load %arg11[%c0_15, %c0_16, %c0_17] : memref<1x8x32xf32, #tpu.memory_space<vmem>>, vector<1x8x32xf32>
    %51 = vector.shape_cast %50 : vector<1x8x32xf32> to vector<8x32xf32>
    %52 = arith.truncf %49 : vector<16x32xf32> to vector<16x32xbf16>
    %c0_18 = arith.constant 0 : index
    %c0_19 = arith.constant 0 : index
    %c0_20 = arith.constant 0 : index
    %53 = vector.load %arg7[%c0_18, %c0_19, %c0_20] : memref<1x32x32xbf16, #tpu.memory_space<vmem>>, vector<1x32x32xbf16>
    %54 = vector.shape_cast %53 : vector<1x32x32xbf16> to vector<32x32xbf16>
    %cst_21 = arith.constant dense<0.000000e+00> : vector<16x32xf32>
    %55 = tpu.matmul %52, %54, %cst_21 {dimension_numbers = #tpu.dot_dimension_numbers<[1], [0], [0], [1], [0, 0, 1, 1], [], []>} : vector<16x32xbf16>, vector<32x32xbf16>, vector<16x32xf32> -> vector<16x32xf32>
    %56 = vector.extract_strided_slice %51 {offsets = [0, 0], sizes = [1, 32], strides = [1, 1]} : vector<8x32xf32> to vector<1x32xf32>
    %57 = vector.broadcast %56 : vector<1x32xf32> to vector<16x32xf32>
    %58 = arith.addf %55, %57 : vector<16x32xf32>
    %59 = arith.addf %3, %58 : vector<16x32xf32>
    %60 = vector.extract_strided_slice %51 {offsets = [1, 0], sizes = [1, 32], strides = [1, 1]} : vector<8x32xf32> to vector<1x32xf32>
    %61 = vector.extract_strided_slice %51 {offsets = [2, 0], sizes = [1, 32], strides = [1, 1]} : vector<8x32xf32> to vector<1x32xf32>
    %cst_22 = arith.constant dense<0.000000e+00> : vector<16xf32>
    %62 = vector.multi_reduction <add>, %59, %cst_22 [1] : vector<16x32xf32> to vector<16xf32>
    %63 = vector.shape_cast %62 : vector<16xf32> to vector<16x1xf32>
    %cst_23 = arith.constant 3.200000e+01 : f32
    %64 = vector.broadcast %cst_23 : f32 to vector<16x1xf32>
    %65 = arith.divf %63, %64 : vector<16x1xf32>
    %66 = vector.broadcast %65 : vector<16x1xf32> to vector<16x32xf32>
    %67 = arith.subf %59, %66 : vector<16x32xf32>
    %68 = arith.mulf %67, %67 : vector<16x32xf32>
    %cst_24 = arith.constant dense<0.000000e+00> : vector<16xf32>
    %69 = vector.multi_reduction <add>, %68, %cst_24 [1] : vector<16x32xf32> to vector<16xf32>
    %70 = vector.shape_cast %69 : vector<16xf32> to vector<16x1xf32>
    %cst_25 = arith.constant 3.200000e+01 : f32
    %71 = vector.broadcast %cst_25 : f32 to vector<16x1xf32>
    %72 = arith.divf %70, %71 : vector<16x1xf32>
    %73 = vector.broadcast %65 : vector<16x1xf32> to vector<16x32xf32>
    %74 = arith.subf %59, %73 : vector<16x32xf32>
    %cst_26 = arith.constant 9.99999996E-13 : f32
    %75 = vector.broadcast %cst_26 : f32 to vector<16x1xf32>
    %76 = arith.addf %72, %75 : vector<16x1xf32>
    %77 = math.rsqrt %76 : vector<16x1xf32>
    %78 = vector.broadcast %77 : vector<16x1xf32> to vector<16x32xf32>
    %79 = arith.mulf %74, %78 : vector<16x32xf32>
    %80 = vector.broadcast %60 : vector<1x32xf32> to vector<16x32xf32>
    %81 = arith.mulf %79, %80 : vector<16x32xf32>
    %82 = vector.broadcast %61 : vector<1x32xf32> to vector<16x32xf32>
    %83 = arith.addf %81, %82 : vector<16x32xf32>
    %84 = arith.truncf %83 : vector<16x32xf32> to vector<16x32xbf16>
    %c0_27 = arith.constant 0 : index
    %c0_28 = arith.constant 0 : index
    %c0_29 = arith.constant 0 : index
    %85 = vector.load %arg8[%c0_27, %c0_28, %c0_29] : memref<1x32x64xbf16, #tpu.memory_space<vmem>>, vector<1x32x64xbf16>
    %86 = vector.shape_cast %85 : vector<1x32x64xbf16> to vector<32x64xbf16>
    %cst_30 = arith.constant dense<0.000000e+00> : vector<16x64xf32>
    %87 = tpu.matmul %84, %86, %cst_30 {dimension_numbers = #tpu.dot_dimension_numbers<[1], [0], [0], [1], [0, 0, 1, 1], [], []>} : vector<16x32xbf16>, vector<32x64xbf16>, vector<16x64xf32> -> vector<16x64xf32>
    %c0_31 = arith.constant 0 : index
    %c0_32 = arith.constant 0 : index
    %c0_33 = arith.constant 0 : index
    %88 = vector.load %arg9[%c0_31, %c0_32, %c0_33] : memref<1x1x64xf32, #tpu.memory_space<vmem>>, vector<1x1x64xf32>
    %89 = vector.shape_cast %88 : vector<1x1x64xf32> to vector<1x64xf32>
    %90 = vector.broadcast %89 : vector<1x64xf32> to vector<16x64xf32>
    %91 = arith.addf %87, %90 : vector<16x64xf32>
    %cst_34 = arith.constant 5.000000e-01 : f32
    %92 = vector.broadcast %cst_34 : f32 to vector<16x64xf32>
    %93 = arith.mulf %92, %91 : vector<16x64xf32>
    %cst_35 = arith.constant 4.471500e-02 : f32
    %94 = vector.broadcast %cst_35 : f32 to vector<16x64xf32>
    %95 = arith.mulf %94, %91 : vector<16x64xf32>
    %96 = arith.mulf %95, %91 : vector<16x64xf32>
    %97 = arith.mulf %96, %91 : vector<16x64xf32>
    %98 = arith.addf %91, %97 : vector<16x64xf32>
    %cst_36 = arith.constant 0.797884583 : f32
    %99 = vector.broadcast %cst_36 : f32 to vector<16x64xf32>
    %100 = arith.mulf %99, %98 : vector<16x64xf32>
    %101 = math.tanh %100 : vector<16x64xf32>
    %cst_37 = arith.constant 1.000000e+00 : f32
    %102 = vector.broadcast %cst_37 : f32 to vector<16x64xf32>
    %103 = arith.addf %102, %101 : vector<16x64xf32>
    %104 = arith.mulf %93, %103 : vector<16x64xf32>
    %105 = arith.truncf %104 : vector<16x64xf32> to vector<16x64xbf16>
    %c0_38 = arith.constant 0 : index
    %c0_39 = arith.constant 0 : index
    %c0_40 = arith.constant 0 : index
    %106 = vector.load %arg10[%c0_38, %c0_39, %c0_40] : memref<1x64x32xbf16, #tpu.memory_space<vmem>>, vector<1x64x32xbf16>
    %107 = vector.shape_cast %106 : vector<1x64x32xbf16> to vector<64x32xbf16>
    %cst_41 = arith.constant dense<0.000000e+00> : vector<16x32xf32>
    %108 = tpu.matmul %105, %107, %cst_41 {dimension_numbers = #tpu.dot_dimension_numbers<[1], [0], [0], [1], [0, 0, 1, 1], [], []>} : vector<16x64xbf16>, vector<64x32xbf16>, vector<16x32xf32> -> vector<16x32xf32>
    %109 = vector.extract_strided_slice %51 {offsets = [3, 0], sizes = [1, 32], strides = [1, 1]} : vector<8x32xf32> to vector<1x32xf32>
    %110 = vector.broadcast %109 : vector<1x32xf32> to vector<16x32xf32>
    %111 = arith.addf %108, %110 : vector<16x32xf32>
    %112 = arith.addf %83, %111 : vector<16x32xf32>
    %113 = vector.extract_strided_slice %51 {offsets = [4, 0], sizes = [1, 32], strides = [1, 1]} : vector<8x32xf32> to vector<1x32xf32>
    %114 = vector.extract_strided_slice %51 {offsets = [5, 0], sizes = [1, 32], strides = [1, 1]} : vector<8x32xf32> to vector<1x32xf32>
    %cst_42 = arith.constant dense<0.000000e+00> : vector<16xf32>
    %115 = vector.multi_reduction <add>, %112, %cst_42 [1] : vector<16x32xf32> to vector<16xf32>
    %116 = vector.shape_cast %115 : vector<16xf32> to vector<16x1xf32>
    %cst_43 = arith.constant 3.200000e+01 : f32
    %117 = vector.broadcast %cst_43 : f32 to vector<16x1xf32>
    %118 = arith.divf %116, %117 : vector<16x1xf32>
    %119 = vector.broadcast %118 : vector<16x1xf32> to vector<16x32xf32>
    %120 = arith.subf %112, %119 : vector<16x32xf32>
    %121 = arith.mulf %120, %120 : vector<16x32xf32>
    %cst_44 = arith.constant dense<0.000000e+00> : vector<16xf32>
    %122 = vector.multi_reduction <add>, %121, %cst_44 [1] : vector<16x32xf32> to vector<16xf32>
    %123 = vector.shape_cast %122 : vector<16xf32> to vector<16x1xf32>
    %cst_45 = arith.constant 3.200000e+01 : f32
    %124 = vector.broadcast %cst_45 : f32 to vector<16x1xf32>
    %125 = arith.divf %123, %124 : vector<16x1xf32>
    %126 = vector.broadcast %118 : vector<16x1xf32> to vector<16x32xf32>
    %127 = arith.subf %112, %126 : vector<16x32xf32>
    %cst_46 = arith.constant 9.99999996E-13 : f32
    %128 = vector.broadcast %cst_46 : f32 to vector<16x1xf32>
    %129 = arith.addf %125, %128 : vector<16x1xf32>
    %130 = math.rsqrt %129 : vector<16x1xf32>
    %131 = vector.broadcast %130 : vector<16x1xf32> to vector<16x32xf32>
    %132 = arith.mulf %127, %131 : vector<16x32xf32>
    %133 = vector.broadcast %113 : vector<1x32xf32> to vector<16x32xf32>
    %134 = arith.mulf %132, %133 : vector<16x32xf32>
    %135 = vector.broadcast %114 : vector<1x32xf32> to vector<16x32xf32>
    %136 = arith.addf %134, %135 : vector<16x32xf32>
    %c0_47 = arith.constant 0 : index
    %c0_48 = arith.constant 0 : index
    %137 = vector.load %arg17[%c0_47, %c0_48] : memref<16x32xf32, #tpu.memory_space<vmem>>, vector<16x32xf32>
    tpu.vector_store %arg17[%c0_47, %c0_48], %136 {strides = array<i32>} : memref<16x32xf32, #tpu.memory_space<vmem>>, vector<16x32xf32>,
    %c1_i32 = arith.constant 1 : i32
    %138 = arith.cmpi eq, %arg1, %c1_i32 : i32
    %139 = arith.extui %138 : i1 to i32
    %c0_i32_49 = arith.constant 0 : i32
    %140 = arith.cmpi ne, %139, %c0_i32_49 : i32
    scf.if %140 {
      %141 = vector.shape_cast %136 : vector<16x32xf32> to vector<2x8x32xf32>
      %142 = vector.extract_strided_slice %141 {offsets = [0, 0, 0], sizes = [2, 1, 32], strides = [1, 1, 1]} : vector<2x8x32xf32> to vector<2x1x32xf32>
      %143 = vector.shape_cast %142 : vector<2x1x32xf32> to vector<2x32xf32>
      %144 = arith.truncf %143 : vector<2x32xf32> to vector<2x32xbf16>
      %c0_50 = arith.constant 0 : index
      %c0_51 = arith.constant 0 : index
      %145 = vector.load %arg12[%c0_50, %c0_51] : memref<32x32xbf16, #tpu.memory_space<vmem>>, vector<32x32xbf16>
      %cst_52 = arith.constant dense<0.000000e+00> : vector<2x32xf32>
      %146 = tpu.matmul %144, %145, %cst_52 {dimension_numbers = #tpu.dot_dimension_numbers<[1], [0], [0], [1], [0, 0, 1, 1], [], []>} : vector<2x32xbf16>, vector<32x32xbf16>, vector<2x32xf32> -> vector<2x32xf32>
      %c0_53 = arith.constant 0 : index
      %c0_54 = arith.constant 0 : index
      %147 = vector.load %arg13[%c0_53, %c0_54] : memref<1x32xf32, #tpu.memory_space<vmem>>, vector<1x32xf32>
      %148 = vector.broadcast %147 : vector<1x32xf32> to vector<2x32xf32>
      %149 = arith.addf %146, %148 : vector<2x32xf32>
      %150 = math.tanh %149 : vector<2x32xf32>
      %151 = arith.truncf %150 : vector<2x32xf32> to vector<2x32xbf16>
      %c0_55 = arith.constant 0 : index
      %c0_56 = arith.constant 0 : index
      %152 = vector.load %arg14[%c0_55, %c0_56] : memref<32x128xbf16, #tpu.memory_space<vmem>>, vector<32x128xbf16>
      %cst_57 = arith.constant dense<0.000000e+00> : vector<2x128xf32>
      %153 = tpu.matmul %151, %152, %cst_57 {dimension_numbers = #tpu.dot_dimension_numbers<[1], [0], [0], [1], [0, 0, 1, 1], [], []>} : vector<2x32xbf16>, vector<32x128xbf16>, vector<2x128xf32> -> vector<2x128xf32>
      %c0_58 = arith.constant 0 : index
      %c0_59 = arith.constant 0 : index
      %154 = vector.load %arg15[%c0_58, %c0_59] : memref<1x128xf32, #tpu.memory_space<vmem>>, vector<1x128xf32>
      %155 = vector.broadcast %154 : vector<1x128xf32> to vector<2x128xf32>
      %156 = arith.addf %153, %155 : vector<2x128xf32>
      %c0_60 = arith.constant 0 : index
      %c0_61 = arith.constant 0 : index
      %157 = vector.load %arg16[%c0_60, %c0_61] : memref<2x128xf32, #tpu.memory_space<vmem>>, vector<2x128xf32>
      tpu.vector_store %arg16[%c0_60, %c0_61], %156 {strides = array<i32>} : memref<2x128xf32, #tpu.memory_space<vmem>>, vector<2x128xf32>,
    } else {
    }
    return
  }
  func.func @transform_0(%arg0: i32, %arg1: i32) -> (i32, i32, i32) {
    %c0_i32 = arith.constant 0 : i32
    %c0_i32_0 = arith.constant 0 : i32
    %c0_i32_1 = arith.constant 0 : i32
    return %arg0, %c0_i32, %c0_i32_0 : i32, i32, i32
  }
  func.func @transform_1(%arg0: i32, %arg1: i32) -> (i32, i32, i32) {
    %c0_i32 = arith.constant 0 : i32
    %c0_i32_0 = arith.constant 0 : i32
    %c0_i32_1 = arith.constant 0 : i32
    return %arg0, %c0_i32, %c0_i32_0 : i32, i32, i32
  }
  func.func @transform_2(%arg0: i32, %arg1: i32) -> (i32, i32) {
    %c0_i32 = arith.constant 0 : i32
    %c0_i32_0 = arith.constant 0 : i32
    %c0_i32_1 = arith.constant 0 : i32
    return %c0_i32, %c0_i32_0 : i32, i32
  }
  func.func @transform_3(%arg0: i32, %arg1: i32) -> (i32, i32, i32) {
    %c0_i32 = arith.constant 0 : i32
    %c0_i32_0 = arith.constant 0 : i32
    %c0_i32_1 = arith.constant 0 : i32
    return %arg1, %c0_i32, %c0_i32_0 : i32, i32, i32
  }
  func.func @transform_4(%arg0: i32, %arg1: i32) -> (i32, i32, i32) {
    %c0_i32 = arith.constant 0 : i32
    %c0_i32_0 = arith.constant 0 : i32
    %c0_i32_1 = arith.constant 0 : i32
    return %arg1, %c0_i32, %c0_i32_0 : i32, i32, i32
  }
  func.func @transform_5(%arg0: i32, %arg1: i32) -> (i32, i32, i32) {
    %c0_i32 = arith.constant 0 : i32
    %c0_i32_0 = arith.constant 0 : i32
    %c0_i32_1 = arith.constant 0 : i32
    return %arg1, %c0_i32, %c0_i32_0 : i32, i32, i32
  }
  func.func @transform_6(%arg0: i32, %arg1: i32) -> (i32, i32, i32) {
    %c0_i32 = arith.constant 0 : i32
    %c0_i32_0 = arith.constant 0 : i32
    %c0_i32_1 = arith.constant 0 : i32
    return %arg1, %c0_i32, %c0_i32_0 : i32, i32, i32
  }
  func.func @transform_7(%arg0: i32, %arg1: i32) -> (i32, i32, i32) {
    %c0_i32 = arith.constant 0 : i32
    %c0_i32_0 = arith.constant 0 : i32
    %c0_i32_1 = arith.constant 0 : i32
    return %arg1, %c0_i32, %c0_i32_0 : i32, i32, i32
  }
  func.func @transform_8(%arg0: i32, %arg1: i32) -> (i32, i32, i32) {
    %c0_i32 = arith.constant 0 : i32
    %c0_i32_0 = arith.constant 0 : i32
    %c0_i32_1 = arith.constant 0 : i32
    return %arg1, %c0_i32, %c0_i32_0 : i32, i32, i32
  }
  func.func @transform_9(%arg0: i32, %arg1: i32) -> (i32, i32, i32) {
    %c0_i32 = arith.constant 0 : i32
    %c0_i32_0 = arith.constant 0 : i32
    %c0_i32_1 = arith.constant 0 : i32
    return %arg1, %c0_i32, %c0_i32_0 : i32, i32, i32
  }
  func.func @transform_10(%arg0: i32, %arg1: i32) -> (i32, i32) {
    %c0_i32 = arith.constant 0 : i32
    %c0_i32_0 = arith.constant 0 : i32
    %c0_i32_1 = arith.constant 0 : i32
    return %c0_i32, %c0_i32_0 : i32, i32
  }
  func.func @transform_11(%arg0: i32, %arg1: i32) -> (i32, i32) {
    %c0_i32 = arith.constant 0 : i32
    %c0_i32_0 = arith.constant 0 : i32
    %c0_i32_1 = arith.constant 0 : i32
    return %c0_i32, %c0_i32_0 : i32, i32
  }
  func.func @transform_12(%arg0: i32, %arg1: i32) -> (i32, i32) {
    %c0_i32 = arith.constant 0 : i32
    %c0_i32_0 = arith.constant 0 : i32
    %c0_i32_1 = arith.constant 0 : i32
    return %c0_i32, %c0_i32_0 : i32, i32
  }
  func.func @transform_13(%arg0: i32, %arg1: i32) -> (i32, i32) {
    %c0_i32 = arith.constant 0 : i32
    %c0_i32_0 = arith.constant 0 : i32
    %c0_i32_1 = arith.constant 0 : i32
    return %c0_i32, %c0_i32_0 : i32, i32
  }
  func.func @transform_14(%arg0: i32, %arg1: i32) -> (i32, i32) {
    %c0_i32 = arith.constant 0 : i32
    %c0_i32_0 = arith.constant 0 : i32
    return %arg0, %c0_i32 : i32, i32
  }
}

</mosaic_0001>

<llo_original>
// kernel: tpu_custom_call.1
$region0: #{tpu_custom_call.1}
  #allocation0 [shape = 'u32[]', space=smem, size = 0x4, offset = 0x4, fixed_abs, tag = 'smem constant byte address 0x4 - core index']
  #allocation1 [shape = 'u32[144,128]{1,0:T(1,128)}', space=vmem, size = 0x12000, scoped, tag = 'internal scratch']
  #allocation2 [shape = 'f32[16,32]{1,0:T(8,128)}', space=vmem, size = 0x2000, scoped, tag = 'scratch operand']
  %s0 = inlined_call_operand.hbm [shape: f32[2,8,32], index: 0, kind: input, shape index: {}]
  %s1 = inlined_call_operand.vmem [shape: f32[2,1,8], index: 1, kind: input, shape index: {}]
  %s2 = inlined_call_operand.hbm [shape: f32[2,32], index: 2, kind: input, shape index: {}]
  %s3 = inlined_call_operand.vmem [shape: bf16[2,32,96], index: 3, kind: input, shape index: {}]
  %s4 = inlined_call_operand.hbm [shape: f32[2,1,96], index: 4, kind: input, shape index: {}]
  %s5 = inlined_call_operand.vmem [shape: bf16[2,32,32], index: 5, kind: input, shape index: {}]
  %s6 = inlined_call_operand.vmem [shape: bf16[2,32,64], index: 6, kind: input, shape index: {}]
  %s7 = inlined_call_operand.hbm [shape: f32[2,1,64], index: 7, kind: input, shape index: {}]
  %s8 = inlined_call_operand.vmem [shape: bf16[2,64,32], index: 8, kind: input, shape index: {}]
  %s9 = inlined_call_operand.vmem [shape: f32[2,8,32], index: 9, kind: input, shape index: {}]
  %s10 = inlined_call_operand.vmem [shape: bf16[32,32], index: 10, kind: input, shape index: {}]
  %s11 = inlined_call_operand.vmem [shape: f32[1,32], index: 11, kind: input, shape index: {}]
  %s12 = inlined_call_operand.hbm [shape: bf16[32,128], index: 12, kind: input, shape index: {}]
  %s13 = inlined_call_operand.vmem [shape: f32[1,128], index: 13, kind: input, shape index: {}]
  %s14 = inlined_call_operand.hbm [shape: f32[2,128], index: 14, kind: output, shape index: {}]
  %s15 = sld [smem:[#allocation0]]
  $region117: #{tpu_custom_call.1} parent=0
    _
  %s17 = ssub.s32 1, %s15
  %s18 = scalar_select 0, %s17, %s15
  $region1: #{tpu_custom_call.1} parent=0
    #allocation3 [shape = 'u8[8192]{0}', space=vmem, size = 0x2000, scoped, tag = 'input window, operand 0, single buffered']
    #allocation4 [shape = 's32[2]{0}', space=sflag, size = 0x8, scoped, tag = 'scoped memory for tpu_custom_call.1']
    #allocation5 [shape = 's32[2]{0}', space=sflag, size = 0x8, scoped, tag = 'scoped memory for tpu_custom_call.1']
    #allocation6 [shape = 'u8[1024]{0}', space=vmem, size = 0x400, scoped, tag = 'input window, operand 2, single buffered']
    #allocation7 [shape = 's32[1]{0}', space=sflag, size = 0x4, scoped, tag = 'scoped memory for tpu_custom_call.1']
    #allocation8 [shape = 'u8[1024]{0}', space=vmem, size = 0x400, scoped, tag = 'input window, operand 4']
    #allocation9 [shape = 'u8[1024]{0}', space=vmem, size = 0x400, scoped, tag = 'input window, operand 7']
    #allocation10 [shape = 'u8[8192]{0}', space=vmem, size = 0x2000, scoped, tag = 'input window, operand 12, single buffered']
    #allocation11 [shape = 'u8[1024]{0}', space=vmem, size = 0x400, scoped, tag = 'output window, operand 0, single buffered']
    %19 = vsyncpa [#allocation4], 0
    %20 = vsyncpa [#allocation7], 0
    %21 = vsyncpa [#allocation5], 0
    loop: start=0, step=1, limit=4
    $region2: #{tpu_custom_call.1} parent=1 // loop_pre_header
      _
    $region3: #{tpu_custom_call.1} parent=1 // loop_header
      %s23 = sphi 0, %s27
      %p24 = scmp.ge.s32.totalorder %s23, 4
      %s30 = sphi 0, %s42
      %s31 = sphi 0, %s38
      %s32 = sphi 0, %s30
      %s33 = sphi 0, %s31
      %s34 = sphi 0, %s32
      %s35 = sphi 0, %s33
      %s45 = sphi 0, %s47
      %s48 = sphi 0, %s45
      %s49 = sphi 0, %s48
      %s65 = sphi 0, %s49
      %s71 = sphi 0, %s73
      %s74 = sphi 0, %s71
      %s75 = sphi 0, %s74
      %s91 = sphi 0, %s75
      %s95 = sphi 0, %s95
      %s97 = sphi 0, %s95
      %s98 = sphi 0, %s97
      %s112 = sphi 0, %s98
      %s118 = sphi 0, %s120
      %s121 = sphi 0, %s118
      %s122 = sphi 0, %s121
      %s138 = sphi 0, %s122
      %s144 = sphi 0, %s146
      %s147 = sphi 0, %s144
      %s148 = sphi 0, %s147
      %s164 = sphi 0, %s148
      %s170 = sphi 0, %s172
      %s173 = sphi 0, %s170
      %s174 = sphi 0, %s173
      %s190 = sphi 0, %s174
      %s196 = sphi 0, %s198
      %s199 = sphi 0, %s196
      %s200 = sphi 0, %s199
      %s216 = sphi 0, %s200
      %s222 = sphi 0, %s224
      %s225 = sphi 0, %s222
      %s226 = sphi 0, %s225
      %s242 = sphi 0, %s226
      %s248 = sphi 0, %s250
      %s251 = sphi 0, %s248
      %s252 = sphi 0, %s251
      %s268 = sphi 0, %s252
      %s274 = sphi 0, %s276
      %s277 = sphi 0, %s274
      %s278 = sphi 0, %s277
      %s294 = sphi 0, %s278
      %s298 = sphi 0, %s298
      %s300 = sphi 0, %s298
      %s301 = sphi 0, %s300
      %s315 = sphi 0, %s301
      %s319 = sphi 0, %s319
      %s321 = sphi 0, %s319
      %s322 = sphi 0, %s321
      %s336 = sphi 0, %s322
      %s340 = sphi 0, %s340
      %s342 = sphi 0, %s340
      %s343 = sphi 0, %s342
      %s357 = sphi 0, %s343
      %s361 = sphi 0, %s361
      %s363 = sphi 0, %s361
      %s364 = sphi 0, %s363
      %s378 = sphi 0, %s364
      %s384 = sphi 0, %s386
      %s387 = sphi 0, %s384
      %s388 = sphi 0, %s387
      %s404 = sphi 0, %s388
    $region4: #{tpu_custom_call.1} parent=1 // loop_header_branch
      %26 = sbr.rel (%p24) target = $region8
    $region5: #{tpu_custom_call.1} parent=1 // loop_body
      %s28 = ssub.s32 %s23, 1
      %s29 = ssub.s32 %s23, 2
      %s36 = sadd.s32 1, %s31
      %p37 = scmp.ge.s32.totalorder %s36, 2
      %s38 = scalar_select %p37, 0, %s36
      %s39 = sadd.s32 1, %s30
      %s40 = scalar_select %p37, %s39, %s30
      %p41 = scmp.ge.s32.totalorder %s40, 1
      %s42 = scalar_select %p41, 0, %s40
      %s43 = ssub.s32 %s30, %s42
      %p44 = scmp.eq.s32.totalorder %s43, 0
      %s46 = sadd.s32 %s45, 1
      %s47 = scalar_select %p44, %s45, %s46
      %p50 = pneg %p44
      %p51 = scmp.eq.s32.totalorder %s23, 1
      %p52 = por %p50, %p51
      %p53 = scmp.ne.s32.totalorder %s45, %s48
      %p54 = scmp.eq.s32.totalorder %s23, 0
      %p55 = por %p53, %p54
      %p56 = scmp.ne.s32.totalorder %s45, %s48
      %p57 = scmp.eq.s32.totalorder %s28, 1
      %p58 = por %p56, %p57
      %p59 = scmp.ne.s32.totalorder %s48, %s49
      %p60 = scmp.eq.s32.totalorder %s28, 0
      %p61 = por %p59, %p60
      %p62 = scmp.ne.s32.totalorder %s48, %s49
      %p63 = scmp.eq.s32.totalorder %s29, 1
      %p64 = por %p62, %p63
      %p66 = scmp.ne.s32.totalorder %s49, %s65
      %p67 = scmp.eq.s32.totalorder %s29, 0
      %p68 = por %p66, %p67
      %s69 = ssub.s32 %s30, %s42
      %p70 = scmp.eq.s32.totalorder %s69, 0
      %s72 = sadd.s32 %s71, 1
      %s73 = scalar_select %p70, %s71, %s72
      %p76 = pneg %p70
      %p77 = scmp.eq.s32.totalorder %s23, 1
      %p78 = por %p76, %p77
      %p79 = scmp.ne.s32.totalorder %s71, %s74
      %p80 = scmp.eq.s32.totalorder %s23, 0
      %p81 = por %p79, %p80
      %p82 = scmp.ne.s32.totalorder %s71, %s74
      %p83 = scmp.eq.s32.totalorder %s28, 1
      %p84 = por %p82, %p83
      %p85 = scmp.ne.s32.totalorder %s74, %s75
      %p86 = scmp.eq.s32.totalorder %s28, 0
      %p87 = por %p85, %p86
      %p88 = scmp.ne.s32.totalorder %s74, %s75
      %p89 = scmp.eq.s32.totalorder %s29, 1
      %p90 = por %p88, %p89
      %p92 = scmp.ne.s32.totalorder %s75, %s91
      %p93 = scmp.eq.s32.totalorder %s29, 0
      %p94 = por %p92, %p93
      %s96 = sadd.s32 %s95, 1
      %p99 = scmp.eq.s32.totalorder %s23, 1
      %p100 = scmp.ne.s32.totalorder %s95, %s97
      %p101 = scmp.eq.s32.totalorder %s23, 0
      %p102 = por %p100, %p101
      %p103 = scmp.ne.s32.totalorder %s95, %s97
      %p104 = scmp.eq.s32.totalorder %s28, 1
      %p105 = por %p103, %p104
      %p106 = scmp.ne.s32.totalorder %s97, %s98
      %p107 = scmp.eq.s32.totalorder %s28, 0
      %p108 = por %p106, %p107
      %p109 = scmp.ne.s32.totalorder %s97, %s98
      %p110 = scmp.eq.s32.totalorder %s29, 1
      %p111 = por %p109, %p110
      %p113 = scmp.ne.s32.totalorder %s98, %s112
      %p114 = scmp.eq.s32.totalorder %s29, 0
      %p115 = por %p113, %p114
      %s116 = ssub.s32 %s31, %s38
      %p117 = scmp.eq.s32.totalorder %s116, 0
      %s119 = sadd.s32 %s118, 1
      %s120 = scalar_select %p117, %s118, %s119
      %p123 = pneg %p117
      %p124 = scmp.eq.s32.totalorder %s23, 1
      %p125 = por %p123, %p124
      %p126 = scmp.ne.s32.totalorder %s118, %s121
      %p127 = scmp.eq.s32.totalorder %s23, 0
      %p128 = por %p126, %p127
      %p129 = scmp.ne.s32.totalorder %s118, %s121
      %p130 = scmp.eq.s32.totalorder %s28, 1
      %p131 = por %p129, %p130
      %p132 = scmp.ne.s32.totalorder %s121, %s122
      %p133 = scmp.eq.s32.totalorder %s28, 0
      %p134 = por %p132, %p133
      %p135 = scmp.ne.s32.totalorder %s121, %s122
      %p136 = scmp.eq.s32.totalorder %s29, 1
      %p137 = por %p135, %p136
      %p139 = scmp.ne.s32.totalorder %s122, %s138
      %p140 = scmp.eq.s32.totalorder %s29, 0
      %p141 = por %p139, %p140
      %s142 = ssub.s32 %s31, %s38
      %p143 = scmp.eq.s32.totalorder %s142, 0
      %s145 = sadd.s32 %s144, 1
      %s146 = scalar_select %p143, %s144, %s145
      %p149 = pneg %p143
      %p150 = scmp.eq.s32.totalorder %s23, 1
      %p151 = por %p149, %p150
      %p152 = scmp.ne.s32.totalorder %s144, %s147
      %p153 = scmp.eq.s32.totalorder %s23, 0
      %p154 = por %p152, %p153
      %p155 = scmp.ne.s32.totalorder %s144, %s147
      %p156 = scmp.eq.s32.totalorder %s28, 1
      %p157 = por %p155, %p156
      %p158 = scmp.ne.s32.totalorder %s147, %s148
      %p159 = scmp.eq.s32.totalorder %s28, 0
      %p160 = por %p158, %p159
      %p161 = scmp.ne.s32.totalorder %s147, %s148
      %p162 = scmp.eq.s32.totalorder %s29, 1
      %p163 = por %p161, %p162
      %p165 = scmp.ne.s32.totalorder %s148, %s164
      %p166 = scmp.eq.s32.totalorder %s29, 0
      %p167 = por %p165, %p166
      %s168 = ssub.s32 %s31, %s38
      %p169 = scmp.eq.s32.totalorder %s168, 0
      %s171 = sadd.s32 %s170, 1
      %s172 = scalar_select %p169, %s170, %s171
      %p175 = pneg %p169
      %p176 = scmp.eq.s32.totalorder %s23, 1
      %p177 = por %p175, %p176
      %p178 = scmp.ne.s32.totalorder %s170, %s173
      %p179 = scmp.eq.s32.totalorder %s23, 0
      %p180 = por %p178, %p179
      %p181 = scmp.ne.s32.totalorder %s170, %s173
      %p182 = scmp.eq.s32.totalorder %s28, 1
      %p183 = por %p181, %p182
      %p184 = scmp.ne.s32.totalorder %s173, %s174
      %p185 = scmp.eq.s32.totalorder %s28, 0
      %p186 = por %p184, %p185
      %p187 = scmp.ne.s32.totalorder %s173, %s174
      %p188 = scmp.eq.s32.totalorder %s29, 1
      %p189 = por %p187, %p188
      %p191 = scmp.ne.s32.totalorder %s174, %s190
      %p192 = scmp.eq.s32.totalorder %s29, 0
      %p193 = por %p191, %p192
      %s194 = ssub.s32 %s31, %s38
      %p195 = scmp.eq.s32.totalorder %s194, 0
      %s197 = sadd.s32 %s196, 1
      %s198 = scalar_select %p195, %s196, %s197
      %p201 = pneg %p195
      %p202 = scmp.eq.s32.totalorder %s23, 1
      %p203 = por %p201, %p202
      %p204 = scmp.ne.s32.totalorder %s196, %s199
      %p205 = scmp.eq.s32.totalorder %s23, 0
      %p206 = por %p204, %p205
      %p207 = scmp.ne.s32.totalorder %s196, %s199
      %p208 = scmp.eq.s32.totalorder %s28, 1
      %p209 = por %p207, %p208
      %p210 = scmp.ne.s32.totalorder %s199, %s200
      %p211 = scmp.eq.s32.totalorder %s28, 0
      %p212 = por %p210, %p211
      %p213 = scmp.ne.s32.totalorder %s199, %s200
      %p214 = scmp.eq.s32.totalorder %s29, 1
      %p215 = por %p213, %p214
      %p217 = scmp.ne.s32.totalorder %s200, %s216
      %p218 = scmp.eq.s32.totalorder %s29, 0
      %p219 = por %p217, %p218
      %s220 = ssub.s32 %s31, %s38
      %p221 = scmp.eq.s32.totalorder %s220, 0
      %s223 = sadd.s32 %s222, 1
      %s224 = scalar_select %p221, %s222, %s223
      %p227 = pneg %p221
      %p228 = scmp.eq.s32.totalorder %s23, 1
      %p229 = por %p227, %p228
      %p230 = scmp.ne.s32.totalorder %s222, %s225
      %p231 = scmp.eq.s32.totalorder %s23, 0
      %p232 = por %p230, %p231
      %p233 = scmp.ne.s32.totalorder %s222, %s225
      %p234 = scmp.eq.s32.totalorder %s28, 1
      %p235 = por %p233, %p234
      %p236 = scmp.ne.s32.totalorder %s225, %s226
      %p237 = scmp.eq.s32.totalorder %s28, 0
      %p238 = por %p236, %p237
      %p239 = scmp.ne.s32.totalorder %s225, %s226
      %p240 = scmp.eq.s32.totalorder %s29, 1
      %p241 = por %p239, %p240
      %p243 = scmp.ne.s32.totalorder %s226, %s242
      %p244 = scmp.eq.s32.totalorder %s29, 0
      %p245 = por %p243, %p244
      %s246 = ssub.s32 %s31, %s38
      %p247 = scmp.eq.s32.totalorder %s246, 0
      %s249 = sadd.s32 %s248, 1
      %s250 = scalar_select %p247, %s248, %s249
      %p253 = pneg %p247
      %p254 = scmp.eq.s32.totalorder %s23, 1
      %p255 = por %p253, %p254
      %p256 = scmp.ne.s32.totalorder %s248, %s251
      %p257 = scmp.eq.s32.totalorder %s23, 0
      %p258 = por %p256, %p257
      %p259 = scmp.ne.s32.totalorder %s248, %s251
      %p260 = scmp.eq.s32.totalorder %s28, 1
      %p261 = por %p259, %p260
      %p262 = scmp.ne.s32.totalorder %s251, %s252
      %p263 = scmp.eq.s32.totalorder %s28, 0
      %p264 = por %p262, %p263
      %p265 = scmp.ne.s32.totalorder %s251, %s252
      %p266 = scmp.eq.s32.totalorder %s29, 1
      %p267 = por %p265, %p266
      %p269 = scmp.ne.s32.totalorder %s252, %s268
      %p270 = scmp.eq.s32.totalorder %s29, 0
      %p271 = por %p269, %p270
      %s272 = ssub.s32 %s31, %s38
      %p273 = scmp.eq.s32.totalorder %s272, 0
      %s275 = sadd.s32 %s274, 1
      %s276 = scalar_select %p273, %s274, %s275
      %p279 = pneg %p273
      %p280 = scmp.eq.s32.totalorder %s23, 1
      %p281 = por %p279, %p280
      %p282 = scmp.ne.s32.totalorder %s274, %s277
      %p283 = scmp.eq.s32.totalorder %s23, 0
      %p284 = por %p282, %p283
      %p285 = scmp.ne.s32.totalorder %s274, %s277
      %p286 = scmp.eq.s32.totalorder %s28, 1
      %p287 = por %p285, %p286
      %p288 = scmp.ne.s32.totalorder %s277, %s278
      %p289 = scmp.eq.s32.totalorder %s28, 0
      %p290 = por %p288, %p289
      %p291 = scmp.ne.s32.totalorder %s277, %s278
      %p292 = scmp.eq.s32.totalorder %s29, 1
      %p293 = por %p291, %p292
      %p295 = scmp.ne.s32.totalorder %s278, %s294
      %p296 = scmp.eq.s32.totalorder %s29, 0
      %p297 = por %p295, %p296
      %s299 = sadd.s32 %s298, 1
      %p302 = scmp.eq.s32.totalorder %s23, 1
      %p303 = scmp.ne.s32.totalorder %s298, %s300
      %p304 = scmp.eq.s32.totalorder %s23, 0
      %p305 = por %p303, %p304
      %p306 = scmp.ne.s32.totalorder %s298, %s300
      %p307 = scmp.eq.s32.totalorder %s28, 1
      %p308 = por %p306, %p307
      %p309 = scmp.ne.s32.totalorder %s300, %s301
      %p310 = scmp.eq.s32.totalorder %s28, 0
      %p311 = por %p309, %p310
      %p312 = scmp.ne.s32.totalorder %s300, %s301
      %p313 = scmp.eq.s32.totalorder %s29, 1
      %p314 = por %p312, %p313
      %p316 = scmp.ne.s32.totalorder %s301, %s315
      %p317 = scmp.eq.s32.totalorder %s29, 0
      %p318 = por %p316, %p317
      %s320 = sadd.s32 %s319, 1
      %p323 = scmp.eq.s32.totalorder %s23, 1
      %p324 = scmp.ne.s32.totalorder %s319, %s321
      %p325 = scmp.eq.s32.totalorder %s23, 0
      %p326 = por %p324, %p325
      %p327 = scmp.ne.s32.totalorder %s319, %s321
      %p328 = scmp.eq.s32.totalorder %s28, 1
      %p329 = por %p327, %p328
      %p330 = scmp.ne.s32.totalorder %s321, %s322
      %p331 = scmp.eq.s32.totalorder %s28, 0
      %p332 = por %p330, %p331
      %p333 = scmp.ne.s32.totalorder %s321, %s322
      %p334 = scmp.eq.s32.totalorder %s29, 1
      %p335 = por %p333, %p334
      %p337 = scmp.ne.s32.totalorder %s322, %s336
      %p338 = scmp.eq.s32.totalorder %s29, 0
      %p339 = por %p337, %p338
      %s341 = sadd.s32 %s340, 1
      %p344 = scmp.eq.s32.totalorder %s23, 1
      %p345 = scmp.ne.s32.totalorder %s340, %s342
      %p346 = scmp.eq.s32.totalorder %s23, 0
      %p347 = por %p345, %p346
      %p348 = scmp.ne.s32.totalorder %s340, %s342
      %p349 = scmp.eq.s32.totalorder %s28, 1
      %p350 = por %p348, %p349
      %p351 = scmp.ne.s32.totalorder %s342, %s343
      %p352 = scmp.eq.s32.totalorder %s28, 0
      %p353 = por %p351, %p352
      %p354 = scmp.ne.s32.totalorder %s342, %s343
      %p355 = scmp.eq.s32.totalorder %s29, 1
      %p356 = por %p354, %p355
      %p358 = scmp.ne.s32.totalorder %s343, %s357
      %p359 = scmp.eq.s32.totalorder %s29, 0
      %p360 = por %p358, %p359
      %s362 = sadd.s32 %s361, 1
      %p365 = scmp.eq.s32.totalorder %s23, 1
      %p366 = scmp.ne.s32.totalorder %s361, %s363
      %p367 = scmp.eq.s32.totalorder %s23, 0
      %p368 = por %p366, %p367
      %p369 = scmp.ne.s32.totalorder %s361, %s363
      %p370 = scmp.eq.s32.totalorder %s28, 1
      %p371 = por %p369, %p370
      %p372 = scmp.ne.s32.totalorder %s363, %s364
      %p373 = scmp.eq.s32.totalorder %s28, 0
      %p374 = por %p372, %p373
      %p375 = scmp.ne.s32.totalorder %s363, %s364
      %p376 = scmp.eq.s32.totalorder %s29, 1
      %p377 = por %p375, %p376
      %p379 = scmp.ne.s32.totalorder %s364, %s378
      %p380 = scmp.eq.s32.totalorder %s29, 0
      %p381 = por %p379, %p380
      %s382 = ssub.s32 %s30, %s42
      %p383 = scmp.eq.s32.totalorder %s382, 0
      %s385 = sadd.s32 %s384, 1
      %s386 = scalar_select %p383, %s384, %s385
      %p389 = pneg %p383
      %p390 = scmp.eq.s32.totalorder %s23, 1
      %p391 = por %p389, %p390
      %p392 = scmp.ne.s32.totalorder %s384, %s387
      %p393 = scmp.eq.s32.totalorder %s23, 0
      %p394 = por %p392, %p393
      %p395 = scmp.ne.s32.totalorder %s384, %s387
      %p396 = scmp.eq.s32.totalorder %s28, 1
      %p397 = por %p395, %p396
      %p398 = scmp.ne.s32.totalorder %s387, %s388
      %p399 = scmp.eq.s32.totalorder %s28, 0
      %p400 = por %p398, %p399
      %p401 = scmp.ne.s32.totalorder %s387, %s388
      %p402 = scmp.eq.s32.totalorder %s29, 1
      %p403 = por %p401, %p402
      %p405 = scmp.ne.s32.totalorder %s388, %s404
      %p406 = scmp.eq.s32.totalorder %s29, 0
      %p407 = por %p405, %p406
      %p408 = scmp.le.s32.totalorder 1, %s23
      %p409 = scmp.lt.s32.totalorder %s23, 3
      %p410 = pnand %p408, %p409
      %p411 = pneg %p410
      // Predicated region
      $region9: #{tpu_custom_call.1} parent=5 // pred_check
        _
      $region10: #{tpu_custom_call.1} parent=5 // pred_check_branch
        %413 = sbr.rel (%p410) target = $region12
      $region11: #{tpu_custom_call.1} parent=5 // pred_region
        %s414 = ssub.s32 %s23, 1
        // Predicated region
        $region13: #{tpu_custom_call.1} parent=11 // pred_check
          %p415 = pneg %p61
        $region14: #{tpu_custom_call.1} parent=11 // pred_check_branch
          %417 = sbr.rel (%p415) target = $region16
        $region15: #{tpu_custom_call.1} parent=11 // pred_region
          %s418 = smul.u32 2, %s32
          %s420 = ssub.s32 256, 256
          %421 = vsyncadd [#allocation4], %s420
          %s422 = smul.addr %s418, 128
          %s423 = scalar_lea.hbm %s0, %s422
          %s424 = sshll.u32 [#allocation3], 4
          %s425 = int_to_ptr.vmem [resolvable:$true] %s424
          %430 = dma.hbm_to_vmem [thread:$0]  %s423, 256, %s425, [#allocation4], 128, 128, 8
        $region16: #{tpu_custom_call.1} parent=11 // pred_fallthru
          _
        // Predicated region
        $region17: #{tpu_custom_call.1} parent=11 // pred_check
          %p431 = pneg %p87
        $region18: #{tpu_custom_call.1} parent=11 // pred_check_branch
          %433 = sbr.rel (%p431) target = $region20
        $region19: #{tpu_custom_call.1} parent=11 // pred_region
          %s434 = smul.u32 2, %s32
          %p435 = scmp.lt.s32.totalorder %s434, 1
          %s436 = scalar_select %p435, %s434, 1
          %s437 = scalar_lea.vmem %s1, %s436
          %s438 = smul.u32 2, %s32
        $region20: #{tpu_custom_call.1} parent=11 // pred_fallthru
          _
        // Predicated region
        $region21: #{tpu_custom_call.1} parent=11 // pred_check
          %p439 = pneg %p108
        $region22: #{tpu_custom_call.1} parent=11 // pred_check_branch
          %441 = sbr.rel (%p439) target = $region24
        $region23: #{tpu_custom_call.1} parent=11 // pred_region
          %s443 = ssub.s32 32, 32
          %444 = vsyncadd [#allocation7], %s443
          %s446 = sshll.u32 [#allocation6], 4
          %s447 = int_to_ptr.vmem [resolvable:$true] %s446
          %449 = dma.hbm_to_vmem [thread:$0]  %s2, 32, %s447, [#allocation7]
        $region24: #{tpu_custom_call.1} parent=11 // pred_fallthru
          _
        // Predicated region
        $region25: #{tpu_custom_call.1} parent=11 // pred_check
          %p450 = pneg %p311
        $region26: #{tpu_custom_call.1} parent=11 // pred_check_branch
          %452 = sbr.rel (%p450) target = $region28
        $region27: #{tpu_custom_call.1} parent=11 // pred_region
          _
        $region28: #{tpu_custom_call.1} parent=11 // pred_fallthru
          _
        // Predicated region
        $region29: #{tpu_custom_call.1} parent=11 // pred_check
          %p453 = pneg %p332
        $region30: #{tpu_custom_call.1} parent=11 // pred_check_branch
          %455 = sbr.rel (%p453) target = $region32
        $region31: #{tpu_custom_call.1} parent=11 // pred_region
          _
        $region32: #{tpu_custom_call.1} parent=11 // pred_fallthru
          _
        // Predicated region
        $region33: #{tpu_custom_call.1} parent=11 // pred_check
          %p456 = pneg %p353
        $region34: #{tpu_custom_call.1} parent=11 // pred_check_branch
          %458 = sbr.rel (%p456) target = $region36
        $region35: #{tpu_custom_call.1} parent=11 // pred_region
          %s460 = ssub.s32 256, 256
          %461 = vsyncadd [#allocation7], %s460
          %s462 = sshll.u32 [#allocation10], 4
          %s463 = int_to_ptr.vmem [resolvable:$true] %s462
          %468 = dma.hbm_to_vmem [thread:$0]  %s12, 256, %s463, [#allocation7], 64, 64, 4
        $region36: #{tpu_custom_call.1} parent=11 // pred_fallthru
          _
        // Predicated region
        $region37: #{tpu_custom_call.1} parent=11 // pred_check
          %p469 = pneg %p374
        $region38: #{tpu_custom_call.1} parent=11 // pred_check_branch
          %471 = sbr.rel (%p469) target = $region40
        $region39: #{tpu_custom_call.1} parent=11 // pred_region
          _
        $region40: #{tpu_custom_call.1} parent=11 // pred_fallthru
          _
      $region12: #{tpu_custom_call.1} parent=5 // pred_fallthru
        _
      %p472 = scmp.lt.s32.totalorder %s23, 2
      // Predicated region
      $region41: #{tpu_custom_call.1} parent=5 // pred_check
        %p473 = pneg %p472
      $region42: #{tpu_custom_call.1} parent=5 // pred_check_branch
        %475 = sbr.rel (%p473) target = $region44
      $region43: #{tpu_custom_call.1} parent=5 // pred_region
        // Predicated region
        $region45: #{tpu_custom_call.1} parent=43 // pred_check
          %p476 = pneg %p128
        $region46: #{tpu_custom_call.1} parent=43 // pred_check_branch
          %478 = sbr.rel (%p476) target = $region48
        $region47: #{tpu_custom_call.1} parent=43 // pred_region
          %p479 = scmp.lt.s32.totalorder %s31, 1
          %s480 = scalar_select %p479, %s31, 1
          %s481 = smul.addr %s480, 4
          %s482 = smul.addr %s481, 4
          %s483 = scalar_lea.vmem %s3, %s482
        $region48: #{tpu_custom_call.1} parent=43 // pred_fallthru
          _
        // Predicated region
        $region49: #{tpu_custom_call.1} parent=43 // pred_check
          %p484 = pneg %p154
        $region50: #{tpu_custom_call.1} parent=43 // pred_check_branch
          %486 = sbr.rel (%p484) target = $region52
        $region51: #{tpu_custom_call.1} parent=43 // pred_region
          %s487 = sand.u32 %s23, 1
          %s488 = scalar_lea.sflag [#allocation4], %s487
          %s489 = sand.u32 %s144, 1
          %s490 = scalar_lea.vmem [#allocation8], %s489
          %s492 = ssub.s32 16, 16
          %493 = vsyncadd %s488, %s492
          %s494 = smul.addr %s31, 16
          %s495 = scalar_lea.hbm %s4, %s494
          %s497 = sshll.u32 %s490, 4
          %s498 = int_to_ptr.vmem [resolvable:$true] %s497
          %500 = dma.hbm_to_vmem [thread:$0]  %s495, 16, %s498, %s488
        $region52: #{tpu_custom_call.1} parent=43 // pred_fallthru
          _
        // Predicated region
        $region53: #{tpu_custom_call.1} parent=43 // pred_check
          %p501 = pneg %p180
        $region54: #{tpu_custom_call.1} parent=43 // pred_check_branch
          %503 = sbr.rel (%p501) target = $region56
        $region55: #{tpu_custom_call.1} parent=43 // pred_region
          %p504 = scmp.lt.s32.totalorder %s31, 1
          %s505 = scalar_select %p504, %s31, 1
          %s506 = smul.addr %s505, 4
          %s507 = smul.addr %s506, 4
          %s508 = scalar_lea.vmem %s5, %s507
        $region56: #{tpu_custom_call.1} parent=43 // pred_fallthru
          _
        // Predicated region
        $region57: #{tpu_custom_call.1} parent=43 // pred_check
          %p509 = pneg %p206
        $region58: #{tpu_custom_call.1} parent=43 // pred_check_branch
          %511 = sbr.rel (%p509) target = $region60
        $region59: #{tpu_custom_call.1} parent=43 // pred_region
          %p512 = scmp.lt.s32.totalorder %s31, 1
          %s513 = scalar_select %p512, %s31, 1
          %s514 = smul.addr %s513, 4
          %s515 = smul.addr %s514, 4
          %s516 = scalar_lea.vmem %s6, %s515
        $region60: #{tpu_custom_call.1} parent=43 // pred_fallthru
          _
        // Predicated region
        $region61: #{tpu_custom_call.1} parent=43 // pred_check
          %p517 = pneg %p232
        $region62: #{tpu_custom_call.1} parent=43 // pred_check_branch
          %519 = sbr.rel (%p517) target = $region64
        $region63: #{tpu_custom_call.1} parent=43 // pred_region
          %s520 = sand.u32 %s23, 1
          %s521 = scalar_lea.sflag [#allocation4], %s520
          %s522 = sand.u32 %s222, 1
          %s523 = scalar_lea.vmem [#allocation9], %s522
          %s525 = ssub.s32 16, 16
          %526 = vsyncadd %s521, %s525
          %s527 = smul.addr %s31, 16
          %s528 = scalar_lea.hbm %s7, %s527
          %s530 = sshll.u32 %s523, 4
          %s531 = int_to_ptr.vmem [resolvable:$true] %s530
          %533 = dma.hbm_to_vmem [thread:$0]  %s528, 16, %s531, %s521
        $region64: #{tpu_custom_call.1} parent=43 // pred_fallthru
          _
        // Predicated region
        $region65: #{tpu_custom_call.1} parent=43 // pred_check
          %p534 = pneg %p258
        $region66: #{tpu_custom_call.1} parent=43 // pred_check_branch
          %536 = sbr.rel (%p534) target = $region68
        $region67: #{tpu_custom_call.1} parent=43 // pred_region
          %p537 = scmp.lt.s32.totalorder %s31, 1
          %s538 = scalar_select %p537, %s31, 1
          %s539 = smul.addr %s538, 8
          %s540 = smul.addr %s539, 4
          %s541 = scalar_lea.vmem %s8, %s540
        $region68: #{tpu_custom_call.1} parent=43 // pred_fallthru
          _
        // Predicated region
        $region69: #{tpu_custom_call.1} parent=43 // pred_check
          %p542 = pneg %p284
        $region70: #{tpu_custom_call.1} parent=43 // pred_check_branch
          %544 = sbr.rel (%p542) target = $region72
        $region71: #{tpu_custom_call.1} parent=43 // pred_region
          %p545 = scmp.lt.s32.totalorder %s31, 1
          %s546 = scalar_select %p545, %s31, 1
          %s547 = smul.addr %s546, 8
          %s548 = scalar_lea.vmem %s9, %s547
        $region72: #{tpu_custom_call.1} parent=43 // pred_fallthru
          _
      $region44: #{tpu_custom_call.1} parent=5 // pred_fallthru
        _
      %p549 = scmp.le.s32.totalorder 1, %s23
      %p550 = scmp.lt.s32.totalorder %s23, 3
      %p551 = pnand %p549, %p550
      %p552 = pneg %p551
      // Predicated region
      $region73: #{tpu_custom_call.1} parent=5 // pred_check
        _
      $region74: #{tpu_custom_call.1} parent=5 // pred_check_branch
        %554 = sbr.rel (%p551) target = $region76
      $region75: #{tpu_custom_call.1} parent=5 // pred_region
        %s555 = ssub.s32 %s23, 1
        // Predicated region
        $region77: #{tpu_custom_call.1} parent=75 // pred_check
          %p556 = pneg %p61
        $region78: #{tpu_custom_call.1} parent=75 // pred_check_branch
          %558 = sbr.rel (%p556) target = $region80
        $region79: #{tpu_custom_call.1} parent=75 // pred_region
          %559 = dma.done [#allocation4], 256
        $region80: #{tpu_custom_call.1} parent=75 // pred_fallthru
          _
        // Predicated region
        $region81: #{tpu_custom_call.1} parent=75 // pred_check
          %p560 = pneg %p108
        $region82: #{tpu_custom_call.1} parent=75 // pred_check_branch
          %562 = sbr.rel (%p560) target = $region84
        $region83: #{tpu_custom_call.1} parent=75 // pred_region
          %563 = dma.done [#allocation7], 32
        $region84: #{tpu_custom_call.1} parent=75 // pred_fallthru
          _
        %s564 = sand.u32 %s28, 1
        %s565 = scalar_lea.sflag [#allocation4], %s564
        %s566 = sand.u32 %s147, 1
        %s567 = scalar_lea.vmem [#allocation8], %s566
        // Predicated region
        $region85: #{tpu_custom_call.1} parent=75 // pred_check
          %p568 = pneg %p160
        $region86: #{tpu_custom_call.1} parent=75 // pred_check_branch
          %570 = sbr.rel (%p568) target = $region88
        $region87: #{tpu_custom_call.1} parent=75 // pred_region
          %571 = dma.done %s565, 16
        $region88: #{tpu_custom_call.1} parent=75 // pred_fallthru
          _
        %s572 = sand.u32 %s28, 1
        %s573 = scalar_lea.sflag [#allocation4], %s572
        %s574 = sand.u32 %s225, 1
        %s575 = scalar_lea.vmem [#allocation9], %s574
        // Predicated region
        $region89: #{tpu_custom_call.1} parent=75 // pred_check
          %p576 = pneg %p238
        $region90: #{tpu_custom_call.1} parent=75 // pred_check_branch
          %578 = sbr.rel (%p576) target = $region92
        $region91: #{tpu_custom_call.1} parent=75 // pred_region
          %579 = dma.done %s573, 16
        $region92: #{tpu_custom_call.1} parent=75 // pred_fallthru
          _
        // Predicated region
        $region93: #{tpu_custom_call.1} parent=75 // pred_check
          %p580 = pneg %p353
        $region94: #{tpu_custom_call.1} parent=75 // pred_check_branch
          %582 = sbr.rel (%p580) target = $region96
        $region95: #{tpu_custom_call.1} parent=75 // pred_region
          %583 = dma.done [#allocation7], 256
        $region96: #{tpu_custom_call.1} parent=75 // pred_fallthru
          _
        %p584 = pneg %p61
        %p585 = pneg %p58
        %s586 = smul.u32 2, %s32
        %p587 = scmp.lt.s32.totalorder %s586, 1
        %s588 = scalar_select %p587, %s586, 1
        %s589 = scalar_lea.vmem %s1, %s588
        %p590 = pneg %p87
        %p591 = pneg %p84
        %p592 = pneg %p108
        %p593 = pneg %p105
        %p594 = scmp.lt.s32.totalorder %s33, 1
        %s595 = scalar_select %p594, %s33, 1
        %s596 = smul.addr %s595, 4
        %s597 = smul.addr %s596, 4
        %s598 = scalar_lea.vmem %s3, %s597
        %p599 = pneg %p134
        %p600 = pneg %p131
        %s601 = sand.u32 %s28, 1
        %s602 = scalar_lea.sflag [#allocation4], %s601
        %s603 = sand.u32 %s147, 1
        %s604 = scalar_lea.vmem [#allocation8], %s603
        %p605 = pneg %p160
        %p606 = pneg %p157
        %p607 = scmp.lt.s32.totalorder %s33, 1
        %s608 = scalar_select %p607, %s33, 1
        %s609 = smul.addr %s608, 4
        %s610 = smul.addr %s609, 4
        %s611 = scalar_lea.vmem %s5, %s610
        %p612 = pneg %p186
        %p613 = pneg %p183
        %p614 = scmp.lt.s32.totalorder %s33, 1
        %s615 = scalar_select %p614, %s33, 1
        %s616 = smul.addr %s615, 4
        %s617 = smul.addr %s616, 4
        %s618 = scalar_lea.vmem %s6, %s617
        %p619 = pneg %p212
        %p620 = pneg %p209
        %s621 = sand.u32 %s28, 1
        %s622 = scalar_lea.sflag [#allocation4], %s621
        %s623 = sand.u32 %s225, 1
        %s624 = scalar_lea.vmem [#allocation9], %s623
        %p625 = pneg %p238
        %p626 = pneg %p235
        %p627 = scmp.lt.s32.totalorder %s33, 1
        %s628 = scalar_select %p627, %s33, 1
        %s629 = smul.addr %s628, 8
        %s630 = smul.addr %s629, 4
        %s631 = scalar_lea.vmem %s8, %s630
        %p632 = pneg %p264
        %p633 = pneg %p261
        %p634 = scmp.lt.s32.totalorder %s33, 1
        %s635 = scalar_select %p634, %s33, 1
        %s636 = smul.addr %s635, 8
        %s637 = scalar_lea.vmem %s9, %s636
        %p638 = pneg %p290
        %p639 = pneg %p287
        %p640 = pneg %p311
        %p641 = pneg %p308
        %p642 = pneg %p332
        %p643 = pneg %p329
        %p644 = pneg %p353
        %p645 = pneg %p350
        %p646 = pneg %p374
        %p647 = pneg %p371
        %p648 = pneg %p400
        %p649 = pneg %p397
        %s650 = smul.u32 2, %s32
        %s651 = smul.u32 2, %s32
        %p652 = scmp.lt.s32.totalorder %s651, 1
        %s653 = scalar_select %p652, %s651, 1
        %s654 = scalar_lea.vmem %s1, %s653
        %s655 = smul.u32 2, %s32
        %p656 = scmp.lt.s32.totalorder %s33, 1
        %s657 = scalar_select %p656, %s33, 1
        %s658 = smul.addr %s657, 4
        %s659 = smul.addr %s658, 4
        %s660 = scalar_lea.vmem %s3, %s659
        %p661 = scmp.lt.s32.totalorder %s33, 1
        %s662 = scalar_select %p661, %s33, 1
        %s663 = smul.addr %s662, 4
        %s664 = smul.addr %s663, 4
        %s665 = scalar_lea.vmem %s5, %s664
        %p666 = scmp.lt.s32.totalorder %s33, 1
        %s667 = scalar_select %p666, %s33, 1
        %s668 = smul.addr %s667, 4
        %s669 = smul.addr %s668, 4
        %s670 = scalar_lea.vmem %s6, %s669
        %p671 = scmp.lt.s32.totalorder %s33, 1
        %s672 = scalar_select %p671, %s33, 1
        %s673 = smul.addr %s672, 8
        %s674 = smul.addr %s673, 4
        %s675 = scalar_lea.vmem %s8, %s674
        %p676 = scmp.lt.s32.totalorder %s33, 1
        %s677 = scalar_select %p676, %s33, 1
        %s678 = smul.addr %s677, 8
        %s679 = scalar_lea.vmem %s9, %s678
        %p681 = scmp.eq.s32.totalorder %s33, 0
        // Predicated region
        $region97: #{tpu_custom_call.1} parent=75 // pred_check
          %p682 = pneg %p681
        $region98: #{tpu_custom_call.1} parent=75 // pred_check_branch
          %684 = sbr.rel (%p682) target = $region100
        $region99: #{tpu_custom_call.1} parent=75 // pred_region
          %v685 = vld [vmem:[#allocation3] sm:$0xff]
          %v686 = vld [vmem:[#allocation3 + $0x8] sm:$0xff]
          %v687 = vld [vmem:[#allocation6] sm:$0x1]
          %v688 = vld [vmem:[#allocation6 + $0x1] sm:$0x1]
          %vm689 = vcmask 261120
          %v690 = vsel %vm689, %v685, 0.0
          %691 = vadd.xlane.f32.xlu0 %v690
          %v692 = vpop.xlane.xlu0 %691
          %v693 = vsel %vm689, %v686, 0.0
          %694 = vadd.xlane.f32.xlu0 %v693
          %v695 = vpop.xlane.xlu0 %694
          %v696 = vrcp.pop 32.0
          %v697 = vmul.f32 %v692, %v696
          %v698 = vmul.f32 %v695, %v696
          %v699 = vsub.f32 %v685, %v697
          %v700 = vsub.f32 %v686, %v698
          %v701 = vmul.f32 %v699, %v699
          %v702 = vmul.f32 %v700, %v700
          %v703 = vsel %vm689, %v701, 0.0
          %704 = vadd.xlane.f32.xlu0 %v703
          %v705 = vpop.xlane.xlu0 %704
          %v706 = vsel %vm689, %v702, 0.0
          %707 = vadd.xlane.f32.xlu0 %v706
          %v708 = vpop.xlane.xlu0 %707
          %v709 = vmul.f32 %v705, %v696
          %v710 = vmul.f32 %v708, %v696
          %v711 = vadd.f32 %v709, 1e-12
          %v712 = vadd.f32 %v710, 1e-12
          %v713 = vrsqrt.pop %v711
          %v714 = vrsqrt.pop %v712
          %v715 = vmul.f32 %v699, %v713
          %v716 = vmul.f32 %v700, %v714
          %v717 = vlaneseq
          %v718 = vshrl.u32 %v717, 7
          %v719 = vsub.s32 0, %v718
          %v720 = vrot.slane %v687, %v719
          %v721 = vmul.f32 %v715, %v720
          %v722 = vmul.f32 %v716, %v720
          %v723 = vlaneseq
          %v724 = vshrl.u32 %v723, 7
          %v725 = vsub.s32 0, %v724
          %v726 = vrot.slane %v688, %v725
          %v727 = vadd.f32 %v721, %v726
          %v728 = vadd.f32 %v722, %v726
          %729 = vst.msk [vmem:[#allocation2] sm:$0xff] %vm689, %v727
          %730 = vst.msk [vmem:[#allocation2 + $0x8] sm:$0xff] %vm689, %v728
        $region100: #{tpu_custom_call.1} parent=75 // pred_fallthru
          _
        %v731 = vld [vmem:[#allocation2] sm:$0xff]
        %v732 = vld [vmem:[#allocation2 + $0x8] sm:$0xff]
        %v733 = vpack.c.bf16 %v732, %v731
        %v734 = vld [vmem:[%s660] sm:$0xf]
        %v735 = vld [vmem:[%s660 + $0x4] sm:$0xf]
        %v736 = vld [vmem:[%s660 + $0x8] sm:$0xf]
        %v737 = vld [vmem:[%s660 + $0xc] sm:$0xf]
        %v738 = vld [vmem:[%s567] sm:$0x1]
        %v740 = vlaneseq
        %v741 = vshrl.u32 %v740, 7
        %v742 = vsub.s32 0, %v741
        %v743 = vrot.slane %v738, %v742
        %v749 = vunpack.c.l.b16 %v734
        %v750 = vunpack.c.l.b16 %v735
        %v751 = vunpack.c.l.b16 %v736
        %v752 = vunpack.c.l.b16 %v737
        %v753 = vpack.c.b16 %v750, %v749
        %v754 = vpack.c.b16 %v752, %v751
        %vm757 = vcmask 261120
        %v759 = vsel %vm757, %v733, 0
        %761 = vmatprep.subr.bf16.mxu0 0
        %762 = vmatpush1.bf16.msra.mxu0 %v753
        %763 = vmatprep.subr.bf16.mxu0 0
        %764 = vmatpush1.bf16.msra.mxu0 %v754
        %765 = vmatprep.subr.bf16.mxu0 0
        %766 = vmatpush1.bf16.msra.mxu0 0
        %767 = vmatprep.subr.bf16.mxu0 0
        %768 = vmatpush1.bf16.msra.mxu0 0
        %769 = vmatprep.subr.bf16.mxu0 0
        %770 = vmatpush1.bf16.msra.mxu0 0
        %771 = vmatprep.subr.bf16.mxu0 0
        %772 = vmatpush1.bf16.msra.mxu0 0
        %773 = vmatprep.subr.bf16.mxu0 0
        %774 = vmatpush1.bf16.msra.mxu0 0
        %775 = vmatprep.subr.bf16.mxu0 0
        %776 = vmatpush1.bf16.msra.mxu0 0
        %777 = vmatprep.subr.bf16.mxu0 0
        %778 = vmatpush1.bf16.msra.mxu0 0
        %779 = vmatprep.subr.bf16.mxu0 0
        %780 = vmatpush1.bf16.msra.mxu0 0
        %781 = vmatprep.subr.bf16.mxu0 0
        %782 = vmatpush1.bf16.msra.mxu0 0
        %783 = vmatprep.subr.bf16.mxu0 0
        %784 = vmatpush1.bf16.msra.mxu0 0
        %785 = vmatprep.subr.bf16.mxu0 0
        %786 = vmatpush1.bf16.msra.mxu0 0
        %787 = vmatprep.subr.bf16.mxu0 0
        %788 = vmatpush1.bf16.msra.mxu0 0
        %789 = vmatprep.subr.bf16.mxu0 0
        %790 = vmatpush1.bf16.msra.mxu0 0
        %791 = vmatprep.subr.bf16.mxu0 0
        %792 = vmatpush1.bf16.msra.mxu0 0
        %793 = vmatprep.mubr.bf16.mxu0 0
        %794 = vmatmul.mubr.bf16.gmra.mrb[0].mxu0 %v759
        %v795 = vpop.f32.mrb[0].mxu0
        %v796 = vadd.f32 %v743, %v795
        %v797 = vpop.f32.mrb[0].mxu0
        %v798 = vpop.f32.mrb[0].mxu0
        %v799 = vadd.f32 %v743, %v798
        %v800 = vpop.f32.mrb[0].mxu0
        %801 = vdwg.mxu0
        %804 = vrot.lane.b32.xlu0 %v796, 112
        %v805 = vpop.permute.xlu0 %804
        %806 = vrot.lane.b32.xlu0 %v799, 112
        %v807 = vpop.permute.xlu0 %806
        %v810 = vcombine.high %v796, 0.0
        %v812 = vunpack.c.l.s4 1983009808
        %v813 = vunpack.c.0.s8 %v812
        %v814 = vlaneseq
        %v815 = vshrl.u32 %v814, 7
        %v816 = vsub.s32 %v813, %v815
        %v817 = vrot.slane %v796, %v816
        %v819 = vunpack.c.l.s4 1983009808
        %v820 = vunpack.c.0.s8 %v819
        %v821 = vlaneseq
        %v822 = vshrl.u32 %v821, 7
        %v823 = vsub.s32 %v820, %v822
        %v824 = vrot.slane %v810, %v823
        %v825 = vcombine.high %v805, 0.0
        %v827 = vunpack.c.l.s4 1983009808
        %v828 = vunpack.c.0.s8 %v827
        %v829 = vlaneseq
        %v830 = vshrl.u32 %v829, 7
        %v831 = vsub.s32 %v828, %v830
        %v832 = vrot.slane %v805, %v831
        %v834 = vunpack.c.l.s4 1983009808
        %v835 = vunpack.c.0.s8 %v834
        %v836 = vlaneseq
        %v837 = vshrl.u32 %v836, 7
        %v838 = vsub.s32 %v835, %v837
        %v839 = vrot.slane %v825, %v838
        %v840 = vcombine.low %v817, %v832
        %v841 = vcombine.high %v817, %v832
        %v843 = vunpack.c.l.s4 1934713408
        %v844 = vunpack.c.0.s8 %v843
        %v845 = vlaneseq
        %v846 = vshrl.u32 %v845, 7
        %v847 = vsub.s32 %v844, %v846
        %v848 = vrot.slane %v840, %v847
        %v850 = vunpack.c.l.s4 1934713408
        %v851 = vunpack.c.0.s8 %v850
        %v852 = vlaneseq
        %v853 = vshrl.u32 %v852, 7
        %v854 = vsub.s32 %v851, %v853
        %v855 = vrot.slane %v841, %v854
        %v856 = vcombine.low %v824, %v839
        %v857 = vcombine.high %v824, %v839
        %v859 = vunpack.c.l.s4 1934713408
        %v860 = vunpack.c.0.s8 %v859
        %v861 = vlaneseq
        %v862 = vshrl.u32 %v861, 7
        %v863 = vsub.s32 %v860, %v862
        %v864 = vrot.slane %v856, %v863
        %v866 = vunpack.c.l.s4 1934713408
        %v867 = vunpack.c.0.s8 %v866
        %v868 = vlaneseq
        %v869 = vshrl.u32 %v868, 7
        %v870 = vsub.s32 %v867, %v869
        %v871 = vrot.slane %v857, %v870
        %v872 = vcombine.high %v848, 0.0
        %v873 = vcombine.high %v855, 0.0
        %v874 = vcombine.high %v864, 0.0
        %v875 = vcombine.high %v871, 0.0
        %v876 = vcombine.high %v799, 0.0
        %v878 = vunpack.c.l.s4 1983009808
        %v879 = vunpack.c.0.s8 %v878
        %v880 = vlaneseq
        %v881 = vshrl.u32 %v880, 7
        %v882 = vsub.s32 %v879, %v881
        %v883 = vrot.slane %v799, %v882
        %v885 = vunpack.c.l.s4 1983009808
        %v886 = vunpack.c.0.s8 %v885
        %v887 = vlaneseq
        %v888 = vshrl.u32 %v887, 7
        %v889 = vsub.s32 %v886, %v888
        %v890 = vrot.slane %v876, %v889
        %v891 = vcombine.high %v807, 0.0
        %v893 = vunpack.c.l.s4 1983009808
        %v894 = vunpack.c.0.s8 %v893
        %v895 = vlaneseq
        %v896 = vshrl.u32 %v895, 7
        %v897 = vsub.s32 %v894, %v896
        %v898 = vrot.slane %v807, %v897
        %v900 = vunpack.c.l.s4 1983009808
        %v901 = vunpack.c.0.s8 %v900
        %v902 = vlaneseq
        %v903 = vshrl.u32 %v902, 7
        %v904 = vsub.s32 %v901, %v903
        %v905 = vrot.slane %v891, %v904
        %v906 = vcombine.low %v883, %v898
        %v907 = vcombine.high %v883, %v898
        %v909 = vunpack.c.l.s4 1934713408
        %v910 = vunpack.c.0.s8 %v909
        %v911 = vlaneseq
        %v912 = vshrl.u32 %v911, 7
        %v913 = vsub.s32 %v910, %v912
        %v914 = vrot.slane %v906, %v913
        %v916 = vunpack.c.l.s4 1934713408
        %v917 = vunpack.c.0.s8 %v916
        %v918 = vlaneseq
        %v919 = vshrl.u32 %v918, 7
        %v920 = vsub.s32 %v917, %v919
        %v921 = vrot.slane %v907, %v920
        %v922 = vcombine.low %v890, %v905
        %v923 = vcombine.high %v890, %v905
        %v925 = vunpack.c.l.s4 1934713408
        %v926 = vunpack.c.0.s8 %v925
        %v927 = vlaneseq
        %v928 = vshrl.u32 %v927, 7
        %v929 = vsub.s32 %v926, %v928
        %v930 = vrot.slane %v922, %v929
        %v932 = vunpack.c.l.s4 1934713408
        %v933 = vunpack.c.0.s8 %v932
        %v934 = vlaneseq
        %v935 = vshrl.u32 %v934, 7
        %v936 = vsub.s32 %v933, %v935
        %v937 = vrot.slane %v923, %v936
        %v938 = vcombine.high %v914, 0.0
        %v939 = vcombine.high %v921, 0.0
        %v940 = vcombine.high %v930, 0.0
        %v941 = vcombine.high %v937, 0.0
        %942 = vrot.lane.b32.xlu0 %v796, 96
        %v943 = vpop.permute.xlu0 %942
        %944 = vrot.lane.b32.xlu0 %v799, 96
        %v945 = vpop.permute.xlu0 %944
        %946 = vrot.lane.b32.xlu0 %v805, 96
        %v947 = vpop.permute.xlu0 %946
        %948 = vrot.lane.b32.xlu0 %v807, 96
        %v949 = vpop.permute.xlu0 %948
        %v954 = vcombine.high %v943, 0.0
        %v956 = vunpack.c.l.s4 1983009808
        %v957 = vunpack.c.0.s8 %v956
        %v958 = vlaneseq
        %v959 = vshrl.u32 %v958, 7
        %v960 = vsub.s32 %v957, %v959
        %v961 = vrot.slane %v943, %v960
        %v963 = vunpack.c.l.s4 1983009808
        %v964 = vunpack.c.0.s8 %v963
        %v965 = vlaneseq
        %v966 = vshrl.u32 %v965, 7
        %v967 = vsub.s32 %v964, %v966
        %v968 = vrot.slane %v954, %v967
        %v969 = vcombine.high %v947, 0.0
        %v971 = vunpack.c.l.s4 1983009808
        %v972 = vunpack.c.0.s8 %v971
        %v973 = vlaneseq
        %v974 = vshrl.u32 %v973, 7
        %v975 = vsub.s32 %v972, %v974
        %v976 = vrot.slane %v947, %v975
        %v978 = vunpack.c.l.s4 1983009808
        %v979 = vunpack.c.0.s8 %v978
        %v980 = vlaneseq
        %v981 = vshrl.u32 %v980, 7
        %v982 = vsub.s32 %v979, %v981
        %v983 = vrot.slane %v969, %v982
        %v984 = vcombine.low %v961, %v976
        %v985 = vcombine.high %v961, %v976
        %v987 = vunpack.c.l.s4 1934713408
        %v988 = vunpack.c.0.s8 %v987
        %v989 = vlaneseq
        %v990 = vshrl.u32 %v989, 7
        %v991 = vsub.s32 %v988, %v990
        %v992 = vrot.slane %v984, %v991
        %v994 = vunpack.c.l.s4 1934713408
        %v995 = vunpack.c.0.s8 %v994
        %v996 = vlaneseq
        %v997 = vshrl.u32 %v996, 7
        %v998 = vsub.s32 %v995, %v997
        %v999 = vrot.slane %v985, %v998
        %v1000 = vcombine.low %v968, %v983
        %v1001 = vcombine.high %v968, %v983
        %v1003 = vunpack.c.l.s4 1934713408
        %v1004 = vunpack.c.0.s8 %v1003
        %v1005 = vlaneseq
        %v1006 = vshrl.u32 %v1005, 7
        %v1007 = vsub.s32 %v1004, %v1006
        %v1008 = vrot.slane %v1000, %v1007
        %v1010 = vunpack.c.l.s4 1934713408
        %v1011 = vunpack.c.0.s8 %v1010
        %v1012 = vlaneseq
        %v1013 = vshrl.u32 %v1012, 7
        %v1014 = vsub.s32 %v1011, %v1013
        %v1015 = vrot.slane %v1001, %v1014
        %v1016 = vcombine.high %v992, 0.0
        %v1017 = vcombine.high %v999, 0.0
        %v1018 = vcombine.high %v1008, 0.0
        %v1019 = vcombine.high %v1015, 0.0
        %v1020 = vcombine.high %v945, 0.0
        %v1022 = vunpack.c.l.s4 1983009808
        %v1023 = vunpack.c.0.s8 %v1022
        %v1024 = vlaneseq
        %v1025 = vshrl.u32 %v1024, 7
        %v1026 = vsub.s32 %v1023, %v1025
        %v1027 = vrot.slane %v945, %v1026
        %v1029 = vunpack.c.l.s4 1983009808
        %v1030 = vunpack.c.0.s8 %v1029
        %v1031 = vlaneseq
        %v1032 = vshrl.u32 %v1031, 7
        %v1033 = vsub.s32 %v1030, %v1032
        %v1034 = vrot.slane %v1020, %v1033
        %v1035 = vcombine.high %v949, 0.0
        %v1037 = vunpack.c.l.s4 1983009808
        %v1038 = vunpack.c.0.s8 %v1037
        %v1039 = vlaneseq
        %v1040 = vshrl.u32 %v1039, 7
        %v1041 = vsub.s32 %v1038, %v1040
        %v1042 = vrot.slane %v949, %v1041
        %v1044 = vunpack.c.l.s4 1983009808
        %v1045 = vunpack.c.0.s8 %v1044
        %v1046 = vlaneseq
        %v1047 = vshrl.u32 %v1046, 7
        %v1048 = vsub.s32 %v1045, %v1047
        %v1049 = vrot.slane %v1035, %v1048
        %v1050 = vcombine.low %v1027, %v1042
        %v1051 = vcombine.high %v1027, %v1042
        %v1053 = vunpack.c.l.s4 1934713408
        %v1054 = vunpack.c.0.s8 %v1053
        %v1055 = vlaneseq
        %v1056 = vshrl.u32 %v1055, 7
        %v1057 = vsub.s32 %v1054, %v1056
        %v1058 = vrot.slane %v1050, %v1057
        %v1060 = vunpack.c.l.s4 1934713408
        %v1061 = vunpack.c.0.s8 %v1060
        %v1062 = vlaneseq
        %v1063 = vshrl.u32 %v1062, 7
        %v1064 = vsub.s32 %v1061, %v1063
        %v1065 = vrot.slane %v1051, %v1064
        %v1066 = vcombine.low %v1034, %v1049
        %v1067 = vcombine.high %v1034, %v1049
        %v1069 = vunpack.c.l.s4 1934713408
        %v1070 = vunpack.c.0.s8 %v1069
        %v1071 = vlaneseq
        %v1072 = vshrl.u32 %v1071, 7
        %v1073 = vsub.s32 %v1070, %v1072
        %v1074 = vrot.slane %v1066, %v1073
        %v1076 = vunpack.c.l.s4 1934713408
        %v1077 = vunpack.c.0.s8 %v1076
        %v1078 = vlaneseq
        %v1079 = vshrl.u32 %v1078, 7
        %v1080 = vsub.s32 %v1077, %v1079
        %v1081 = vrot.slane %v1067, %v1080
        %v1082 = vcombine.high %v1058, 0.0
        %v1083 = vcombine.high %v1065, 0.0
        %v1084 = vcombine.high %v1074, 0.0
        %v1085 = vcombine.high %v1081, 0.0
        %1086 = vrot.lane.b32.xlu0 %v796, 64
        %v1087 = vpop.permute.xlu0 %1086
        %1088 = vrot.lane.b32.xlu0 %v799, 64
        %v1089 = vpop.permute.xlu0 %1088
        %1090 = vrot.lane.b32.xlu0 %v805, 64
        %v1091 = vpop.permute.xlu0 %1090
        %1092 = vrot.lane.b32.xlu0 %v807, 64
        %v1093 = vpop.permute.xlu0 %1092
        %v1098 = vcombine.high %v1087, 0.0
        %v1100 = vunpack.c.l.s4 1983009808
        %v1101 = vunpack.c.0.s8 %v1100
        %v1102 = vlaneseq
        %v1103 = vshrl.u32 %v1102, 7
        %v1104 = vsub.s32 %v1101, %v1103
        %v1105 = vrot.slane %v1087, %v1104
        %v1107 = vunpack.c.l.s4 1983009808
        %v1108 = vunpack.c.0.s8 %v1107
        %v1109 = vlaneseq
        %v1110 = vshrl.u32 %v1109, 7
        %v1111 = vsub.s32 %v1108, %v1110
        %v1112 = vrot.slane %v1098, %v1111
        %v1113 = vcombine.high %v1091, 0.0
        %v1115 = vunpack.c.l.s4 1983009808
        %v1116 = vunpack.c.0.s8 %v1115
        %v1117 = vlaneseq
        %v1118 = vshrl.u32 %v1117, 7
        %v1119 = vsub.s32 %v1116, %v1118
        %v1120 = vrot.slane %v1091, %v1119
        %v1122 = vunpack.c.l.s4 1983009808
        %v1123 = vunpack.c.0.s8 %v1122
        %v1124 = vlaneseq
        %v1125 = vshrl.u32 %v1124, 7
        %v1126 = vsub.s32 %v1123, %v1125
        %v1127 = vrot.slane %v1113, %v1126
        %v1128 = vcombine.low %v1105, %v1120
        %v1129 = vcombine.high %v1105, %v1120
        %v1131 = vunpack.c.l.s4 1934713408
        %v1132 = vunpack.c.0.s8 %v1131
        %v1133 = vlaneseq
        %v1134 = vshrl.u32 %v1133, 7
        %v1135 = vsub.s32 %v1132, %v1134
        %v1136 = vrot.slane %v1128, %v1135
        %v1138 = vunpack.c.l.s4 1934713408
        %v1139 = vunpack.c.0.s8 %v1138
        %v1140 = vlaneseq
        %v1141 = vshrl.u32 %v1140, 7
        %v1142 = vsub.s32 %v1139, %v1141
        %v1143 = vrot.slane %v1129, %v1142
        %v1144 = vcombine.low %v1112, %v1127
        %v1145 = vcombine.high %v1112, %v1127
        %v1147 = vunpack.c.l.s4 1934713408
        %v1148 = vunpack.c.0.s8 %v1147
        %v1149 = vlaneseq
        %v1150 = vshrl.u32 %v1149, 7
        %v1151 = vsub.s32 %v1148, %v1150
        %v1152 = vrot.slane %v1144, %v1151
        %v1154 = vunpack.c.l.s4 1934713408
        %v1155 = vunpack.c.0.s8 %v1154
        %v1156 = vlaneseq
        %v1157 = vshrl.u32 %v1156, 7
        %v1158 = vsub.s32 %v1155, %v1157
        %v1159 = vrot.slane %v1145, %v1158
        %v1160 = vcombine.high %v1136, 0.0
        %v1161 = vcombine.high %v1143, 0.0
        %v1162 = vcombine.high %v1152, 0.0
        %v1163 = vcombine.high %v1159, 0.0
        %v1164 = vcombine.high %v1089, 0.0
        %v1166 = vunpack.c.l.s4 1983009808
        %v1167 = vunpack.c.0.s8 %v1166
        %v1168 = vlaneseq
        %v1169 = vshrl.u32 %v1168, 7
        %v1170 = vsub.s32 %v1167, %v1169
        %v1171 = vrot.slane %v1089, %v1170
        %v1173 = vunpack.c.l.s4 1983009808
        %v1174 = vunpack.c.0.s8 %v1173
        %v1175 = vlaneseq
        %v1176 = vshrl.u32 %v1175, 7
        %v1177 = vsub.s32 %v1174, %v1176
        %v1178 = vrot.slane %v1164, %v1177
        %v1179 = vcombine.high %v1093, 0.0
        %v1181 = vunpack.c.l.s4 1983009808
        %v1182 = vunpack.c.0.s8 %v1181
        %v1183 = vlaneseq
        %v1184 = vshrl.u32 %v1183, 7
        %v1185 = vsub.s32 %v1182, %v1184
        %v1186 = vrot.slane %v1093, %v1185
        %v1188 = vunpack.c.l.s4 1983009808
        %v1189 = vunpack.c.0.s8 %v1188
        %v1190 = vlaneseq
        %v1191 = vshrl.u32 %v1190, 7
        %v1192 = vsub.s32 %v1189, %v1191
        %v1193 = vrot.slane %v1179, %v1192
        %v1194 = vcombine.low %v1171, %v1186
        %v1195 = vcombine.high %v1171, %v1186
        %v1197 = vunpack.c.l.s4 1934713408
        %v1198 = vunpack.c.0.s8 %v1197
        %v1199 = vlaneseq
        %v1200 = vshrl.u32 %v1199, 7
        %v1201 = vsub.s32 %v1198, %v1200
        %v1202 = vrot.slane %v1194, %v1201
        %v1204 = vunpack.c.l.s4 1934713408
        %v1205 = vunpack.c.0.s8 %v1204
        %v1206 = vlaneseq
        %v1207 = vshrl.u32 %v1206, 7
        %v1208 = vsub.s32 %v1205, %v1207
        %v1209 = vrot.slane %v1195, %v1208
        %v1210 = vcombine.low %v1178, %v1193
        %v1211 = vcombine.high %v1178, %v1193
        %v1213 = vunpack.c.l.s4 1934713408
        %v1214 = vunpack.c.0.s8 %v1213
        %v1215 = vlaneseq
        %v1216 = vshrl.u32 %v1215, 7
        %v1217 = vsub.s32 %v1214, %v1216
        %v1218 = vrot.slane %v1210, %v1217
        %v1220 = vunpack.c.l.s4 1934713408
        %v1221 = vunpack.c.0.s8 %v1220
        %v1222 = vlaneseq
        %v1223 = vshrl.u32 %v1222, 7
        %v1224 = vsub.s32 %v1221, %v1223
        %v1225 = vrot.slane %v1211, %v1224
        %v1226 = vcombine.high %v1202, 0.0
        %v1227 = vcombine.high %v1209, 0.0
        %v1228 = vcombine.high %v1218, 0.0
        %v1229 = vcombine.high %v1225, 0.0
        %v1230 = vcombine.low %v848, %v855
        %v1232 = vunpack.c.l.s4 1983009808
        %v1233 = vunpack.c.0.s8 %v1232
        %v1234 = vlaneseq
        %v1235 = vshrl.u32 %v1234, 7
        %v1236 = vsub.s32 %v1233, %v1235
        %v1237 = vrot.slane %v1230, %v1236
        %v1238 = vcombine.low %v872, %v873
        %v1240 = vunpack.c.l.s4 1983009808
        %v1241 = vunpack.c.0.s8 %v1240
        %v1242 = vlaneseq
        %v1243 = vshrl.u32 %v1242, 7
        %v1244 = vsub.s32 %v1241, %v1243
        %v1245 = vrot.slane %v1238, %v1244
        %v1246 = vcombine.low %v864, %v871
        %v1248 = vunpack.c.l.s4 1983009808
        %v1249 = vunpack.c.0.s8 %v1248
        %v1250 = vlaneseq
        %v1251 = vshrl.u32 %v1250, 7
        %v1252 = vsub.s32 %v1249, %v1251
        %v1253 = vrot.slane %v1246, %v1252
        %v1254 = vcombine.low %v874, %v875
        %v1256 = vunpack.c.l.s4 1983009808
        %v1257 = vunpack.c.0.s8 %v1256
        %v1258 = vlaneseq
        %v1259 = vshrl.u32 %v1258, 7
        %v1260 = vsub.s32 %v1257, %v1259
        %v1261 = vrot.slane %v1254, %v1260
        %v1262 = vcombine.low %v1237, %v1245
        %v1264 = vunpack.c.l.s4 1934713408
        %v1265 = vunpack.c.0.s8 %v1264
        %v1266 = vlaneseq
        %v1267 = vshrl.u32 %v1266, 7
        %v1268 = vsub.s32 %v1265, %v1267
        %v1269 = vrot.slane %v1262, %v1268
        %v1270 = vcombine.low %v1253, %v1261
        %v1272 = vunpack.c.l.s4 1934713408
        %v1273 = vunpack.c.0.s8 %v1272
        %v1274 = vlaneseq
        %v1275 = vshrl.u32 %v1274, 7
        %v1276 = vsub.s32 %v1273, %v1275
        %v1277 = vrot.slane %v1270, %v1276
        %v1278 = vcombine.low %v1269, %v1277
        %v1279 = vcombine.high %v1269, %v1277
        %v1280 = vcombine.low %v914, %v921
        %v1282 = vunpack.c.l.s4 1983009808
        %v1283 = vunpack.c.0.s8 %v1282
        %v1284 = vlaneseq
        %v1285 = vshrl.u32 %v1284, 7
        %v1286 = vsub.s32 %v1283, %v1285
        %v1287 = vrot.slane %v1280, %v1286
        %v1288 = vcombine.low %v938, %v939
        %v1290 = vunpack.c.l.s4 1983009808
        %v1291 = vunpack.c.0.s8 %v1290
        %v1292 = vlaneseq
        %v1293 = vshrl.u32 %v1292, 7
        %v1294 = vsub.s32 %v1291, %v1293
        %v1295 = vrot.slane %v1288, %v1294
        %v1296 = vcombine.low %v930, %v937
        %v1298 = vunpack.c.l.s4 1983009808
        %v1299 = vunpack.c.0.s8 %v1298
        %v1300 = vlaneseq
        %v1301 = vshrl.u32 %v1300, 7
        %v1302 = vsub.s32 %v1299, %v1301
        %v1303 = vrot.slane %v1296, %v1302
        %v1304 = vcombine.low %v940, %v941
        %v1306 = vunpack.c.l.s4 1983009808
        %v1307 = vunpack.c.0.s8 %v1306
        %v1308 = vlaneseq
        %v1309 = vshrl.u32 %v1308, 7
        %v1310 = vsub.s32 %v1307, %v1309
        %v1311 = vrot.slane %v1304, %v1310
        %v1312 = vcombine.low %v1287, %v1295
        %v1314 = vunpack.c.l.s4 1934713408
        %v1315 = vunpack.c.0.s8 %v1314
        %v1316 = vlaneseq
        %v1317 = vshrl.u32 %v1316, 7
        %v1318 = vsub.s32 %v1315, %v1317
        %v1319 = vrot.slane %v1312, %v1318
        %v1320 = vcombine.low %v1303, %v1311
        %v1322 = vunpack.c.l.s4 1934713408
        %v1323 = vunpack.c.0.s8 %v1322
        %v1324 = vlaneseq
        %v1325 = vshrl.u32 %v1324, 7
        %v1326 = vsub.s32 %v1323, %v1325
        %v1327 = vrot.slane %v1320, %v1326
        %v1328 = vcombine.low %v1319, %v1327
        %v1329 = vcombine.high %v1319, %v1327
        %v1330 = vpack.c.bf16 %v1278, %v1278
        %v1331 = vpack.c.bf16 %v1279, %v1279
        %v1332 = vpack.c.bf16 %v1328, %v1328
        %v1333 = vpack.c.bf16 %v1329, %v1329
        %v1334 = vcombine.low %v992, %v999
        %v1336 = vunpack.c.l.s4 1983009808
        %v1337 = vunpack.c.0.s8 %v1336
        %v1338 = vlaneseq
        %v1339 = vshrl.u32 %v1338, 7
        %v1340 = vsub.s32 %v1337, %v1339
        %v1341 = vrot.slane %v1334, %v1340
        %v1342 = vcombine.low %v1016, %v1017
        %v1344 = vunpack.c.l.s4 1983009808
        %v1345 = vunpack.c.0.s8 %v1344
        %v1346 = vlaneseq
        %v1347 = vshrl.u32 %v1346, 7
        %v1348 = vsub.s32 %v1345, %v1347
        %v1349 = vrot.slane %v1342, %v1348
        %v1350 = vcombine.low %v1008, %v1015
        %v1352 = vunpack.c.l.s4 1983009808
        %v1353 = vunpack.c.0.s8 %v1352
        %v1354 = vlaneseq
        %v1355 = vshrl.u32 %v1354, 7
        %v1356 = vsub.s32 %v1353, %v1355
        %v1357 = vrot.slane %v1350, %v1356
        %v1358 = vcombine.low %v1018, %v1019
        %v1360 = vunpack.c.l.s4 1983009808
        %v1361 = vunpack.c.0.s8 %v1360
        %v1362 = vlaneseq
        %v1363 = vshrl.u32 %v1362, 7
        %v1364 = vsub.s32 %v1361, %v1363
        %v1365 = vrot.slane %v1358, %v1364
        %v1366 = vcombine.low %v1341, %v1349
        %v1368 = vunpack.c.l.s4 1934713408
        %v1369 = vunpack.c.0.s8 %v1368
        %v1370 = vlaneseq
        %v1371 = vshrl.u32 %v1370, 7
        %v1372 = vsub.s32 %v1369, %v1371
        %v1373 = vrot.slane %v1366, %v1372
        %v1374 = vcombine.low %v1357, %v1365
        %v1376 = vunpack.c.l.s4 1934713408
        %v1377 = vunpack.c.0.s8 %v1376
        %v1378 = vlaneseq
        %v1379 = vshrl.u32 %v1378, 7
        %v1380 = vsub.s32 %v1377, %v1379
        %v1381 = vrot.slane %v1374, %v1380
        %v1382 = vcombine.low %v1373, %v1381
        %v1383 = vcombine.high %v1373, %v1381
        %v1384 = vcombine.low %v1058, %v1065
        %v1386 = vunpack.c.l.s4 1983009808
        %v1387 = vunpack.c.0.s8 %v1386
        %v1388 = vlaneseq
        %v1389 = vshrl.u32 %v1388, 7
        %v1390 = vsub.s32 %v1387, %v1389
        %v1391 = vrot.slane %v1384, %v1390
        %v1392 = vcombine.low %v1082, %v1083
        %v1394 = vunpack.c.l.s4 1983009808
        %v1395 = vunpack.c.0.s8 %v1394
        %v1396 = vlaneseq
        %v1397 = vshrl.u32 %v1396, 7
        %v1398 = vsub.s32 %v1395, %v1397
        %v1399 = vrot.slane %v1392, %v1398
        %v1400 = vcombine.low %v1074, %v1081
        %v1402 = vunpack.c.l.s4 1983009808
        %v1403 = vunpack.c.0.s8 %v1402
        %v1404 = vlaneseq
        %v1405 = vshrl.u32 %v1404, 7
        %v1406 = vsub.s32 %v1403, %v1405
        %v1407 = vrot.slane %v1400, %v1406
        %v1408 = vcombine.low %v1084, %v1085
        %v1410 = vunpack.c.l.s4 1983009808
        %v1411 = vunpack.c.0.s8 %v1410
        %v1412 = vlaneseq
        %v1413 = vshrl.u32 %v1412, 7
        %v1414 = vsub.s32 %v1411, %v1413
        %v1415 = vrot.slane %v1408, %v1414
        %v1416 = vcombine.low %v1391, %v1399
        %v1418 = vunpack.c.l.s4 1934713408
        %v1419 = vunpack.c.0.s8 %v1418
        %v1420 = vlaneseq
        %v1421 = vshrl.u32 %v1420, 7
        %v1422 = vsub.s32 %v1419, %v1421
        %v1423 = vrot.slane %v1416, %v1422
        %v1424 = vcombine.low %v1407, %v1415
        %v1426 = vunpack.c.l.s4 1934713408
        %v1427 = vunpack.c.0.s8 %v1426
        %v1428 = vlaneseq
        %v1429 = vshrl.u32 %v1428, 7
        %v1430 = vsub.s32 %v1427, %v1429
        %v1431 = vrot.slane %v1424, %v1430
        %v1432 = vcombine.low %v1423, %v1431
        %v1433 = vcombine.high %v1423, %v1431
        %v1434 = vpack.c.bf16 %v1382, %v1382
        %v1435 = vpack.c.bf16 %v1383, %v1383
        %v1436 = vpack.c.bf16 %v1432, %v1432
        %v1437 = vpack.c.bf16 %v1433, %v1433
        %v1438 = vcombine.low %v1136, %v1143
        %v1440 = vunpack.c.l.s4 1983009808
        %v1441 = vunpack.c.0.s8 %v1440
        %v1442 = vlaneseq
        %v1443 = vshrl.u32 %v1442, 7
        %v1444 = vsub.s32 %v1441, %v1443
        %v1445 = vrot.slane %v1438, %v1444
        %v1446 = vcombine.low %v1160, %v1161
        %v1448 = vunpack.c.l.s4 1983009808
        %v1449 = vunpack.c.0.s8 %v1448
        %v1450 = vlaneseq
        %v1451 = vshrl.u32 %v1450, 7
        %v1452 = vsub.s32 %v1449, %v1451
        %v1453 = vrot.slane %v1446, %v1452
        %v1454 = vcombine.low %v1152, %v1159
        %v1456 = vunpack.c.l.s4 1983009808
        %v1457 = vunpack.c.0.s8 %v1456
        %v1458 = vlaneseq
        %v1459 = vshrl.u32 %v1458, 7
        %v1460 = vsub.s32 %v1457, %v1459
        %v1461 = vrot.slane %v1454, %v1460
        %v1462 = vcombine.low %v1162, %v1163
        %v1464 = vunpack.c.l.s4 1983009808
        %v1465 = vunpack.c.0.s8 %v1464
        %v1466 = vlaneseq
        %v1467 = vshrl.u32 %v1466, 7
        %v1468 = vsub.s32 %v1465, %v1467
        %v1469 = vrot.slane %v1462, %v1468
        %v1470 = vcombine.low %v1445, %v1453
        %v1472 = vunpack.c.l.s4 1934713408
        %v1473 = vunpack.c.0.s8 %v1472
        %v1474 = vlaneseq
        %v1475 = vshrl.u32 %v1474, 7
        %v1476 = vsub.s32 %v1473, %v1475
        %v1477 = vrot.slane %v1470, %v1476
        %v1478 = vcombine.low %v1461, %v1469
        %v1480 = vunpack.c.l.s4 1934713408
        %v1481 = vunpack.c.0.s8 %v1480
        %v1482 = vlaneseq
        %v1483 = vshrl.u32 %v1482, 7
        %v1484 = vsub.s32 %v1481, %v1483
        %v1485 = vrot.slane %v1478, %v1484
        %v1486 = vcombine.low %v1477, %v1485
        %v1487 = vcombine.high %v1477, %v1485
        %v1488 = vcombine.low %v1202, %v1209
        %v1490 = vunpack.c.l.s4 1983009808
        %v1491 = vunpack.c.0.s8 %v1490
        %v1492 = vlaneseq
        %v1493 = vshrl.u32 %v1492, 7
        %v1494 = vsub.s32 %v1491, %v1493
        %v1495 = vrot.slane %v1488, %v1494
        %v1496 = vcombine.low %v1226, %v1227
        %v1498 = vunpack.c.l.s4 1983009808
        %v1499 = vunpack.c.0.s8 %v1498
        %v1500 = vlaneseq
        %v1501 = vshrl.u32 %v1500, 7
        %v1502 = vsub.s32 %v1499, %v1501
        %v1503 = vrot.slane %v1496, %v1502
        %v1504 = vcombine.low %v1218, %v1225
        %v1506 = vunpack.c.l.s4 1983009808
        %v1507 = vunpack.c.0.s8 %v1506
        %v1508 = vlaneseq
        %v1509 = vshrl.u32 %v1508, 7
        %v1510 = vsub.s32 %v1507, %v1509
        %v1511 = vrot.slane %v1504, %v1510
        %v1512 = vcombine.low %v1228, %v1229
        %v1514 = vunpack.c.l.s4 1983009808
        %v1515 = vunpack.c.0.s8 %v1514
        %v1516 = vlaneseq
        %v1517 = vshrl.u32 %v1516, 7
        %v1518 = vsub.s32 %v1515, %v1517
        %v1519 = vrot.slane %v1512, %v1518
        %v1520 = vcombine.low %v1495, %v1503
        %v1522 = vunpack.c.l.s4 1934713408
        %v1523 = vunpack.c.0.s8 %v1522
        %v1524 = vlaneseq
        %v1525 = vshrl.u32 %v1524, 7
        %v1526 = vsub.s32 %v1523, %v1525
        %v1527 = vrot.slane %v1520, %v1526
        %v1528 = vcombine.low %v1511, %v1519
        %v1530 = vunpack.c.l.s4 1934713408
        %v1531 = vunpack.c.0.s8 %v1530
        %v1532 = vlaneseq
        %v1533 = vshrl.u32 %v1532, 7
        %v1534 = vsub.s32 %v1531, %v1533
        %v1535 = vrot.slane %v1528, %v1534
        %v1536 = vcombine.low %v1527, %v1535
        %v1537 = vcombine.high %v1527, %v1535
        %v1538 = vpack.c.bf16 %v1486, %v1486
        %v1539 = vpack.c.bf16 %v1487, %v1487
        %v1540 = vpack.c.bf16 %v1536, %v1536
        %v1541 = vpack.c.bf16 %v1537, %v1537
        %v1542 = vld [vmem:[%s654] sm:$0x1]
        %v1543 = vld [vmem:[%s654 + $0x1] sm:$0x1]
        %v1546 = vlaneseq
        %v1547 = vshrl.u32 %v1546, 7
        %v1548 = vsub.s32 0, %v1547
        %v1549 = vrot.slane %v1542, %v1548
        %v1550 = vlaneseq
        %v1551 = vshrl.u32 %v1550, 7
        %v1552 = vsub.s32 0, %v1551
        %v1553 = vrot.slane %v1543, %v1552
        %vm1556 = vcmask 130048
        %v1558 = vsel %vm1556, %v1330, 0
        %v1561 = vsel %vm1556, %v1434, 0
        %1563 = vmatprep.subr.bf16.mxu0 0
        %1564 = vmatpush1.bf16.xpose.msra.mxu0 %v1561
        %1565 = vmatprep.subr.bf16.mxu0 0
        %1566 = vmatpush1.bf16.xpose.msra.mxu0 0
        %1567 = vmatprep.subr.bf16.mxu0 0
        %1568 = vmatpush1.bf16.xpose.msra.mxu0 0
        %1569 = vmatprep.subr.bf16.mxu0 0
        %1570 = vmatpush1.bf16.xpose.msra.mxu0 0
        %1571 = vmatprep.subr.bf16.mxu0 0
        %1572 = vmatpush1.bf16.xpose.msra.mxu0 0
        %1573 = vmatprep.subr.bf16.mxu0 0
        %1574 = vmatpush1.bf16.xpose.msra.mxu0 0
        %1575 = vmatprep.subr.bf16.mxu0 0
        %1576 = vmatpush1.bf16.xpose.msra.mxu0 0
        %1577 = vmatprep.subr.bf16.mxu0 0
        %1578 = vmatpush1.bf16.xpose.msra.mxu0 0
        %1579 = vmatprep.subr.bf16.mxu0 0
        %1580 = vmatpush1.bf16.xpose.msra.mxu0 0
        %1581 = vmatprep.subr.bf16.mxu0 0
        %1582 = vmatpush1.bf16.xpose.msra.mxu0 0
        %1583 = vmatprep.subr.bf16.mxu0 0
        %1584 = vmatpush1.bf16.xpose.msra.mxu0 0
        %1585 = vmatprep.subr.bf16.mxu0 0
        %1586 = vmatpush1.bf16.xpose.msra.mxu0 0
        %1587 = vmatprep.subr.bf16.mxu0 0
        %1588 = vmatpush1.bf16.xpose.msra.mxu0 0
        %1589 = vmatprep.subr.bf16.mxu0 0
        %1590 = vmatpush1.bf16.xpose.msra.mxu0 0
        %1591 = vmatprep.subr.bf16.mxu0 0
        %1592 = vmatpush1.bf16.xpose.msra.mxu0 0
        %1593 = vmatprep.subr.bf16.mxu0 0
        %1594 = vmatpush1.bf16.xpose.msra.mxu0 0
        %1595 = vmatprep.mubr.bf16.mxu0 0
        %1596 = vmatmul.mubr.bf16.gmra.mrb[0].mxu0 %v1558
        %v1597 = vpop.f32.mrb[0].mxu0
        %v1598 = vadd.f32 %v1549, %v1597
        %v1599 = vpop.f32.mrb[0].mxu0
        %v1600 = vpop.f32.mrb[0].mxu0
        %v1601 = vpop.f32.mrb[0].mxu0
        %1602 = vdwg.mxu0
        %v1604 = vsel %vm1556, %v1331, 0
        %v1607 = vsel %vm1556, %v1435, 0
        %1609 = vmatprep.subr.bf16.mxu0 0
        %1610 = vmatpush1.bf16.xpose.msra.mxu0 %v1607
        %1611 = vmatprep.subr.bf16.mxu0 0
        %1612 = vmatpush1.bf16.xpose.msra.mxu0 0
        %1613 = vmatprep.subr.bf16.mxu0 0
        %1614 = vmatpush1.bf16.xpose.msra.mxu0 0
        %1615 = vmatprep.subr.bf16.mxu0 0
        %1616 = vmatpush1.bf16.xpose.msra.mxu0 0
        %1617 = vmatprep.subr.bf16.mxu0 0
        %1618 = vmatpush1.bf16.xpose.msra.mxu0 0
        %1619 = vmatprep.subr.bf16.mxu0 0
        %1620 = vmatpush1.bf16.xpose.msra.mxu0 0
        %1621 = vmatprep.subr.bf16.mxu0 0
        %1622 = vmatpush1.bf16.xpose.msra.mxu0 0
        %1623 = vmatprep.subr.bf16.mxu0 0
        %1624 = vmatpush1.bf16.xpose.msra.mxu0 0
        %1625 = vmatprep.subr.bf16.mxu0 0
        %1626 = vmatpush1.bf16.xpose.msra.mxu0 0
        %1627 = vmatprep.subr.bf16.mxu0 0
        %1628 = vmatpush1.bf16.xpose.msra.mxu0 0
        %1629 = vmatprep.subr.bf16.mxu0 0
        %1630 = vmatpush1.bf16.xpose.msra.mxu0 0
        %1631 = vmatprep.subr.bf16.mxu0 0
        %1632 = vmatpush1.bf16.xpose.msra.mxu0 0
        %1633 = vmatprep.subr.bf16.mxu0 0
        %1634 = vmatpush1.bf16.xpose.msra.mxu0 0
        %1635 = vmatprep.subr.bf16.mxu0 0
        %1636 = vmatpush1.bf16.xpose.msra.mxu0 0
        %1637 = vmatprep.subr.bf16.mxu0 0
        %1638 = vmatpush1.bf16.xpose.msra.mxu0 0
        %1639 = vmatprep.subr.bf16.mxu0 0
        %1640 = vmatpush1.bf16.xpose.msra.mxu0 0
        %1641 = vmatprep.mubr.bf16.mxu0 0
        %1642 = vmatmul.mubr.bf16.gmra.mrb[0].mxu0 %v1604
        %v1643 = vpop.f32.mrb[0].mxu0
        %v1644 = vadd.f32 %v1549, %v1643
        %v1645 = vpop.f32.mrb[0].mxu0
        %v1646 = vpop.f32.mrb[0].mxu0
        %v1647 = vpop.f32.mrb[0].mxu0
        %1648 = vdwg.mxu0
        %v1650 = vsel %vm1556, %v1332, 0
        %v1653 = vsel %vm1556, %v1436, 0
        %1655 = vmatprep.subr.bf16.mxu0 0
        %1656 = vmatpush1.bf16.xpose.msra.mxu0 %v1653
        %1657 = vmatprep.subr.bf16.mxu0 0
        %1658 = vmatpush1.bf16.xpose.msra.mxu0 0
        %1659 = vmatprep.subr.bf16.mxu0 0
        %1660 = vmatpush1.bf16.xpose.msra.mxu0 0
        %1661 = vmatprep.subr.bf16.mxu0 0
        %1662 = vmatpush1.bf16.xpose.msra.mxu0 0
        %1663 = vmatprep.subr.bf16.mxu0 0
        %1664 = vmatpush1.bf16.xpose.msra.mxu0 0
        %1665 = vmatprep.subr.bf16.mxu0 0
        %1666 = vmatpush1.bf16.xpose.msra.mxu0 0
        %1667 = vmatprep.subr.bf16.mxu0 0
        %1668 = vmatpush1.bf16.xpose.msra.mxu0 0
        %1669 = vmatprep.subr.bf16.mxu0 0
        %1670 = vmatpush1.bf16.xpose.msra.mxu0 0
        %1671 = vmatprep.subr.bf16.mxu0 0
        %1672 = vmatpush1.bf16.xpose.msra.mxu0 0
        %1673 = vmatprep.subr.bf16.mxu0 0
        %1674 = vmatpush1.bf16.xpose.msra.mxu0 0
        %1675 = vmatprep.subr.bf16.mxu0 0
        %1676 = vmatpush1.bf16.xpose.msra.mxu0 0
        %1677 = vmatprep.subr.bf16.mxu0 0
        %1678 = vmatpush1.bf16.xpose.msra.mxu0 0
        %1679 = vmatprep.subr.bf16.mxu0 0
        %1680 = vmatpush1.bf16.xpose.msra.mxu0 0
        %1681 = vmatprep.subr.bf16.mxu0 0
        %1682 = vmatpush1.bf16.xpose.msra.mxu0 0
        %1683 = vmatprep.subr.bf16.mxu0 0
        %1684 = vmatpush1.bf16.xpose.msra.mxu0 0
        %1685 = vmatprep.subr.bf16.mxu0 0
        %1686 = vmatpush1.bf16.xpose.msra.mxu0 0
        %1687 = vmatprep.mubr.bf16.mxu0 0
        %1688 = vmatmul.mubr.bf16.gmra.mrb[0].mxu0 %v1650
        %v1689 = vpop.f32.mrb[0].mxu0
        %v1690 = vadd.f32 %v1553, %v1689
        %v1691 = vpop.f32.mrb[0].mxu0
        %v1692 = vpop.f32.mrb[0].mxu0
        %v1693 = vpop.f32.mrb[0].mxu0
        %1694 = vdwg.mxu0
        %v1696 = vsel %vm1556, %v1333, 0
        %v1699 = vsel %vm1556, %v1437, 0
        %1701 = vmatprep.subr.bf16.mxu0 0
        %1702 = vmatpush1.bf16.xpose.msra.mxu0 %v1699
        %1703 = vmatprep.subr.bf16.mxu0 0
        %1704 = vmatpush1.bf16.xpose.msra.mxu0 0
        %1705 = vmatprep.subr.bf16.mxu0 0
        %1706 = vmatpush1.bf16.xpose.msra.mxu0 0
        %1707 = vmatprep.subr.bf16.mxu0 0
        %1708 = vmatpush1.bf16.xpose.msra.mxu0 0
        %1709 = vmatprep.subr.bf16.mxu0 0
        %1710 = vmatpush1.bf16.xpose.msra.mxu0 0
        %1711 = vmatprep.subr.bf16.mxu0 0
        %1712 = vmatpush1.bf16.xpose.msra.mxu0 0
        %1713 = vmatprep.subr.bf16.mxu0 0
        %1714 = vmatpush1.bf16.xpose.msra.mxu0 0
        %1715 = vmatprep.subr.bf16.mxu0 0
        %1716 = vmatpush1.bf16.xpose.msra.mxu0 0
        %1717 = vmatprep.subr.bf16.mxu0 0
        %1718 = vmatpush1.bf16.xpose.msra.mxu0 0
        %1719 = vmatprep.subr.bf16.mxu0 0
        %1720 = vmatpush1.bf16.xpose.msra.mxu0 0
        %1721 = vmatprep.subr.bf16.mxu0 0
        %1722 = vmatpush1.bf16.xpose.msra.mxu0 0
        %1723 = vmatprep.subr.bf16.mxu0 0
        %1724 = vmatpush1.bf16.xpose.msra.mxu0 0
        %1725 = vmatprep.subr.bf16.mxu0 0
        %1726 = vmatpush1.bf16.xpose.msra.mxu0 0
        %1727 = vmatprep.subr.bf16.mxu0 0
        %1728 = vmatpush1.bf16.xpose.msra.mxu0 0
        %1729 = vmatprep.subr.bf16.mxu0 0
        %1730 = vmatpush1.bf16.xpose.msra.mxu0 0
        %1731 = vmatprep.subr.bf16.mxu0 0
        %1732 = vmatpush1.bf16.xpose.msra.mxu0 0
        %1733 = vmatprep.mubr.bf16.mxu0 0
        %1734 = vmatmul.mubr.bf16.gmra.mrb[0].mxu0 %v1696
        %v1735 = vpop.f32.mrb[0].mxu0
        %v1736 = vadd.f32 %v1553, %v1735
        %v1737 = vpop.f32.mrb[0].mxu0
        %v1738 = vpop.f32.mrb[0].mxu0
        %v1739 = vpop.f32.mrb[0].mxu0
        %1740 = vdwg.mxu0
        %vm1741 = vcmask 64512
        %v1742 = vsel %vm1741, %v1598, -inf
        %1743 = vmax.xlane.f32.xlu0 %v1742
        %v1744 = vpop.xlane.xlu0 %1743
        %v1745 = vsel %vm1741, %v1644, -inf
        %1746 = vmax.xlane.f32.xlu0 %v1745
        %v1747 = vpop.xlane.xlu0 %1746
        %v1748 = vsel %vm1741, %v1690, -inf
        %1749 = vmax.xlane.f32.xlu0 %v1748
        %v1750 = vpop.xlane.xlu0 %1749
        %v1751 = vsel %vm1741, %v1736, -inf
        %1752 = vmax.xlane.f32.xlu0 %v1751
        %v1753 = vpop.xlane.xlu0 %1752
        %v1754 = vsub.f32 %v1598, %v1744
        %v1755 = vsub.f32 %v1644, %v1747
        %v1756 = vsub.f32 %v1690, %v1750
        %v1757 = vsub.f32 %v1736, %v1753
        %v1758 = vmul.f32 %v1754, 1.442695
        %v1759 = vpow.pop %v1758
        %v1760 = vmul.f32 %v1755, 1.442695
        %v1761 = vpow.pop %v1760
        %v1762 = vmul.f32 %v1756, 1.442695
        %v1763 = vpow.pop %v1762
        %v1764 = vmul.f32 %v1757, 1.442695
        %v1765 = vpow.pop %v1764
        %v1766 = vsel %vm1741, %v1759, 0.0
        %1767 = vadd.xlane.f32.xlu0 %v1766
        %v1768 = vpop.xlane.xlu0 %1767
        %v1769 = vsel %vm1741, %v1761, 0.0
        %1770 = vadd.xlane.f32.xlu0 %v1769
        %v1771 = vpop.xlane.xlu0 %1770
        %v1772 = vsel %vm1741, %v1763, 0.0
        %1773 = vadd.xlane.f32.xlu0 %v1772
        %v1774 = vpop.xlane.xlu0 %1773
        %v1775 = vsel %vm1741, %v1765, 0.0
        %1776 = vadd.xlane.f32.xlu0 %v1775
        %v1777 = vpop.xlane.xlu0 %1776
        %v1778 = vrcp.pop %v1768
        %v1779 = vrcp.pop %v1771
        %v1780 = vrcp.pop %v1774
        %v1781 = vrcp.pop %v1777
        %v1782 = vmul.f32 %v1759, %v1778
        %v1783 = vmul.f32 %v1761, %v1779
        %v1784 = vmul.f32 %v1763, %v1780
        %v1785 = vmul.f32 %v1765, %v1781
        %v1786 = vpack.c.bf16 %v1782, %v1782
        %v1787 = vpack.c.bf16 %v1783, %v1783
        %v1788 = vpack.c.bf16 %v1784, %v1784
        %v1789 = vpack.c.bf16 %v1785, %v1785
        %v1791 = vsel %vm1741, %v1786, 0
        %vm1793 = vcmask 1043456
        %v1795 = vsel %vm1793, %v1538, 0
        %1797 = vmatprep.subr.bf16.mxu0 0
        %1798 = vmatpush1.bf16.msra.mxu0 %v1795
        %1799 = vmatprep.subr.bf16.mxu0 0
        %1800 = vmatpush1.bf16.msra.mxu0 0
        %1801 = vmatprep.subr.bf16.mxu0 0
        %1802 = vmatpush1.bf16.msra.mxu0 0
        %1803 = vmatprep.subr.bf16.mxu0 0
        %1804 = vmatpush1.bf16.msra.mxu0 0
        %1805 = vmatprep.subr.bf16.mxu0 0
        %1806 = vmatpush1.bf16.msra.mxu0 0
        %1807 = vmatprep.subr.bf16.mxu0 0
        %1808 = vmatpush1.bf16.msra.mxu0 0
        %1809 = vmatprep.subr.bf16.mxu0 0
        %1810 = vmatpush1.bf16.msra.mxu0 0
        %1811 = vmatprep.subr.bf16.mxu0 0
        %1812 = vmatpush1.bf16.msra.mxu0 0
        %1813 = vmatprep.subr.bf16.mxu0 0
        %1814 = vmatpush1.bf16.msra.mxu0 0
        %1815 = vmatprep.subr.bf16.mxu0 0
        %1816 = vmatpush1.bf16.msra.mxu0 0
        %1817 = vmatprep.subr.bf16.mxu0 0
        %1818 = vmatpush1.bf16.msra.mxu0 0
        %1819 = vmatprep.subr.bf16.mxu0 0
        %1820 = vmatpush1.bf16.msra.mxu0 0
        %1821 = vmatprep.subr.bf16.mxu0 0
        %1822 = vmatpush1.bf16.msra.mxu0 0
        %1823 = vmatprep.subr.bf16.mxu0 0
        %1824 = vmatpush1.bf16.msra.mxu0 0
        %1825 = vmatprep.subr.bf16.mxu0 0
        %1826 = vmatpush1.bf16.msra.mxu0 0
        %1827 = vmatprep.subr.bf16.mxu0 0
        %1828 = vmatpush1.bf16.msra.mxu0 0
        %1829 = vmatprep.mubr.bf16.mxu0 0
        %1830 = vmatmul.mubr.bf16.gmra.mrb[0].mxu0 %v1791
        %v1831 = vpop.f32.mrb[0].mxu0
        %v1832 = vadd.f32 0.0, %v1831
        %v1833 = vpop.f32.mrb[0].mxu0
        %v1834 = vpop.f32.mrb[0].mxu0
        %v1835 = vpop.f32.mrb[0].mxu0
        %1836 = vdwg.mxu0
        %v1838 = vsel %vm1741, %v1787, 0
        %v1841 = vsel %vm1793, %v1539, 0
        %1843 = vmatprep.subr.bf16.mxu0 0
        %1844 = vmatpush1.bf16.msra.mxu0 %v1841
        %1845 = vmatprep.subr.bf16.mxu0 0
        %1846 = vmatpush1.bf16.msra.mxu0 0
        %1847 = vmatprep.subr.bf16.mxu0 0
        %1848 = vmatpush1.bf16.msra.mxu0 0
        %1849 = vmatprep.subr.bf16.mxu0 0
        %1850 = vmatpush1.bf16.msra.mxu0 0
        %1851 = vmatprep.subr.bf16.mxu0 0
        %1852 = vmatpush1.bf16.msra.mxu0 0
        %1853 = vmatprep.subr.bf16.mxu0 0
        %1854 = vmatpush1.bf16.msra.mxu0 0
        %1855 = vmatprep.subr.bf16.mxu0 0
        %1856 = vmatpush1.bf16.msra.mxu0 0
        %1857 = vmatprep.subr.bf16.mxu0 0
        %1858 = vmatpush1.bf16.msra.mxu0 0
        %1859 = vmatprep.subr.bf16.mxu0 0
        %1860 = vmatpush1.bf16.msra.mxu0 0
        %1861 = vmatprep.subr.bf16.mxu0 0
        %1862 = vmatpush1.bf16.msra.mxu0 0
        %1863 = vmatprep.subr.bf16.mxu0 0
        %1864 = vmatpush1.bf16.msra.mxu0 0
        %1865 = vmatprep.subr.bf16.mxu0 0
        %1866 = vmatpush1.bf16.msra.mxu0 0
        %1867 = vmatprep.subr.bf16.mxu0 0
        %1868 = vmatpush1.bf16.msra.mxu0 0
        %1869 = vmatprep.subr.bf16.mxu0 0
        %1870 = vmatpush1.bf16.msra.mxu0 0
        %1871 = vmatprep.subr.bf16.mxu0 0
        %1872 = vmatpush1.bf16.msra.mxu0 0
        %1873 = vmatprep.subr.bf16.mxu0 0
        %1874 = vmatpush1.bf16.msra.mxu0 0
        %1875 = vmatprep.mubr.bf16.mxu0 0
        %1876 = vmatmul.mubr.bf16.gmra.mrb[0].mxu0 %v1838
        %v1877 = vpop.f32.mrb[0].mxu0
        %v1878 = vadd.f32 0.0, %v1877
        %v1879 = vpop.f32.mrb[0].mxu0
        %v1880 = vpop.f32.mrb[0].mxu0
        %v1881 = vpop.f32.mrb[0].mxu0
        %1882 = vdwg.mxu0
        %v1884 = vsel %vm1741, %v1788, 0
        %v1887 = vsel %vm1793, %v1540, 0
        %1889 = vmatprep.subr.bf16.mxu0 0
        %1890 = vmatpush1.bf16.msra.mxu0 %v1887
        %1891 = vmatprep.subr.bf16.mxu0 0
        %1892 = vmatpush1.bf16.msra.mxu0 0
        %1893 = vmatprep.subr.bf16.mxu0 0
        %1894 = vmatpush1.bf16.msra.mxu0 0
        %1895 = vmatprep.subr.bf16.mxu0 0
        %1896 = vmatpush1.bf16.msra.mxu0 0
        %1897 = vmatprep.subr.bf16.mxu0 0
        %1898 = vmatpush1.bf16.msra.mxu0 0
        %1899 = vmatprep.subr.bf16.mxu0 0
        %1900 = vmatpush1.bf16.msra.mxu0 0
        %1901 = vmatprep.subr.bf16.mxu0 0
        %1902 = vmatpush1.bf16.msra.mxu0 0
        %1903 = vmatprep.subr.bf16.mxu0 0
        %1904 = vmatpush1.bf16.msra.mxu0 0
        %1905 = vmatprep.subr.bf16.mxu0 0
        %1906 = vmatpush1.bf16.msra.mxu0 0
        %1907 = vmatprep.subr.bf16.mxu0 0
        %1908 = vmatpush1.bf16.msra.mxu0 0
        %1909 = vmatprep.subr.bf16.mxu0 0
        %1910 = vmatpush1.bf16.msra.mxu0 0
        %1911 = vmatprep.subr.bf16.mxu0 0
        %1912 = vmatpush1.bf16.msra.mxu0 0
        %1913 = vmatprep.subr.bf16.mxu0 0
        %1914 = vmatpush1.bf16.msra.mxu0 0
        %1915 = vmatprep.subr.bf16.mxu0 0
        %1916 = vmatpush1.bf16.msra.mxu0 0
        %1917 = vmatprep.subr.bf16.mxu0 0
        %1918 = vmatpush1.bf16.msra.mxu0 0
        %1919 = vmatprep.subr.bf16.mxu0 0
        %1920 = vmatpush1.bf16.msra.mxu0 0
        %1921 = vmatprep.mubr.bf16.mxu0 0
        %1922 = vmatmul.mubr.bf16.gmra.mrb[0].mxu0 %v1884
        %v1923 = vpop.f32.mrb[0].mxu0
        %v1924 = vadd.f32 0.0, %v1923
        %v1925 = vpop.f32.mrb[0].mxu0
        %v1926 = vpop.f32.mrb[0].mxu0
        %v1927 = vpop.f32.mrb[0].mxu0
        %1928 = vdwg.mxu0
        %v1930 = vsel %vm1741, %v1789, 0
        %v1933 = vsel %vm1793, %v1541, 0
        %1935 = vmatprep.subr.bf16.mxu0 0
        %1936 = vmatpush1.bf16.msra.mxu0 %v1933
        %1937 = vmatprep.subr.bf16.mxu0 0
        %1938 = vmatpush1.bf16.msra.mxu0 0
        %1939 = vmatprep.subr.bf16.mxu0 0
        %1940 = vmatpush1.bf16.msra.mxu0 0
        %1941 = vmatprep.subr.bf16.mxu0 0
        %1942 = vmatpush1.bf16.msra.mxu0 0
        %1943 = vmatprep.subr.bf16.mxu0 0
        %1944 = vmatpush1.bf16.msra.mxu0 0
        %1945 = vmatprep.subr.bf16.mxu0 0
        %1946 = vmatpush1.bf16.msra.mxu0 0
        %1947 = vmatprep.subr.bf16.mxu0 0
        %1948 = vmatpush1.bf16.msra.mxu0 0
        %1949 = vmatprep.subr.bf16.mxu0 0
        %1950 = vmatpush1.bf16.msra.mxu0 0
        %1951 = vmatprep.subr.bf16.mxu0 0
        %1952 = vmatpush1.bf16.msra.mxu0 0
        %1953 = vmatprep.subr.bf16.mxu0 0
        %1954 = vmatpush1.bf16.msra.mxu0 0
        %1955 = vmatprep.subr.bf16.mxu0 0
        %1956 = vmatpush1.bf16.msra.mxu0 0
        %1957 = vmatprep.subr.bf16.mxu0 0
        %1958 = vmatpush1.bf16.msra.mxu0 0
        %1959 = vmatprep.subr.bf16.mxu0 0
        %1960 = vmatpush1.bf16.msra.mxu0 0
        %1961 = vmatprep.subr.bf16.mxu0 0
        %1962 = vmatpush1.bf16.msra.mxu0 0
        %1963 = vmatprep.subr.bf16.mxu0 0
        %1964 = vmatpush1.bf16.msra.mxu0 0
        %1965 = vmatprep.subr.bf16.mxu0 0
        %1966 = vmatpush1.bf16.msra.mxu0 0
        %1967 = vmatprep.mubr.bf16.mxu0 0
        %1968 = vmatmul.mubr.bf16.gmra.mrb[0].mxu0 %v1930
        %v1969 = vpop.f32.mrb[0].mxu0
        %v1970 = vadd.f32 0.0, %v1969
        %v1971 = vpop.f32.mrb[0].mxu0
        %v1972 = vpop.f32.mrb[0].mxu0
        %v1973 = vpop.f32.mrb[0].mxu0
        %1974 = vdwg.mxu0
        %v1975 = vcombine.high %v1832, 0.0
        %v1977 = vunpack.c.l.s4 1983009808
        %v1978 = vunpack.c.0.s8 %v1977
        %v1979 = vlaneseq
        %v1980 = vshrl.u32 %v1979, 7
        %v1981 = vsub.s32 %v1978, %v1980
        %v1982 = vrot.slane %v1832, %v1981
        %v1984 = vunpack.c.l.s4 1983009808
        %v1985 = vunpack.c.0.s8 %v1984
        %v1986 = vlaneseq
        %v1987 = vshrl.u32 %v1986, 7
        %v1988 = vsub.s32 %v1985, %v1987
        %v1989 = vrot.slane %v1975, %v1988
        %v1990 = vcombine.high %v1878, 0.0
        %v1992 = vunpack.c.l.s4 1983009808
        %v1993 = vunpack.c.0.s8 %v1992
        %v1994 = vlaneseq
        %v1995 = vshrl.u32 %v1994, 7
        %v1996 = vsub.s32 %v1993, %v1995
        %v1997 = vrot.slane %v1878, %v1996
        %v1999 = vunpack.c.l.s4 1983009808
        %v2000 = vunpack.c.0.s8 %v1999
        %v2001 = vlaneseq
        %v2002 = vshrl.u32 %v2001, 7
        %v2003 = vsub.s32 %v2000, %v2002
        %v2004 = vrot.slane %v1990, %v2003
        %v2005 = vcombine.low %v1982, %v1997
        %v2006 = vcombine.high %v1982, %v1997
        %v2008 = vunpack.c.l.s4 1934713408
        %v2009 = vunpack.c.0.s8 %v2008
        %v2010 = vlaneseq
        %v2011 = vshrl.u32 %v2010, 7
        %v2012 = vsub.s32 %v2009, %v2011
        %v2013 = vrot.slane %v2005, %v2012
        %v2015 = vunpack.c.l.s4 1934713408
        %v2016 = vunpack.c.0.s8 %v2015
        %v2017 = vlaneseq
        %v2018 = vshrl.u32 %v2017, 7
        %v2019 = vsub.s32 %v2016, %v2018
        %v2020 = vrot.slane %v2006, %v2019
        %v2021 = vcombine.low %v1989, %v2004
        %v2022 = vcombine.high %v1989, %v2004
        %v2024 = vunpack.c.l.s4 1934713408
        %v2025 = vunpack.c.0.s8 %v2024
        %v2026 = vlaneseq
        %v2027 = vshrl.u32 %v2026, 7
        %v2028 = vsub.s32 %v2025, %v2027
        %v2029 = vrot.slane %v2021, %v2028
        %v2031 = vunpack.c.l.s4 1934713408
        %v2032 = vunpack.c.0.s8 %v2031
        %v2033 = vlaneseq
        %v2034 = vshrl.u32 %v2033, 7
        %v2035 = vsub.s32 %v2032, %v2034
        %v2036 = vrot.slane %v2022, %v2035
        %v2037 = vcombine.high %v2013, 0.0
        %v2038 = vcombine.high %v2020, 0.0
        %v2039 = vcombine.high %v2029, 0.0
        %v2040 = vcombine.high %v2036, 0.0
        %v2041 = vcombine.high %v1924, 0.0
        %v2043 = vunpack.c.l.s4 1983009808
        %v2044 = vunpack.c.0.s8 %v2043
        %v2045 = vlaneseq
        %v2046 = vshrl.u32 %v2045, 7
        %v2047 = vsub.s32 %v2044, %v2046
        %v2048 = vrot.slane %v1924, %v2047
        %v2050 = vunpack.c.l.s4 1983009808
        %v2051 = vunpack.c.0.s8 %v2050
        %v2052 = vlaneseq
        %v2053 = vshrl.u32 %v2052, 7
        %v2054 = vsub.s32 %v2051, %v2053
        %v2055 = vrot.slane %v2041, %v2054
        %v2056 = vcombine.high %v1970, 0.0
        %v2058 = vunpack.c.l.s4 1983009808
        %v2059 = vunpack.c.0.s8 %v2058
        %v2060 = vlaneseq
        %v2061 = vshrl.u32 %v2060, 7
        %v2062 = vsub.s32 %v2059, %v2061
        %v2063 = vrot.slane %v1970, %v2062
        %v2065 = vunpack.c.l.s4 1983009808
        %v2066 = vunpack.c.0.s8 %v2065
        %v2067 = vlaneseq
        %v2068 = vshrl.u32 %v2067, 7
        %v2069 = vsub.s32 %v2066, %v2068
        %v2070 = vrot.slane %v2056, %v2069
        %v2071 = vcombine.low %v2048, %v2063
        %v2072 = vcombine.high %v2048, %v2063
        %v2074 = vunpack.c.l.s4 1934713408
        %v2075 = vunpack.c.0.s8 %v2074
        %v2076 = vlaneseq
        %v2077 = vshrl.u32 %v2076, 7
        %v2078 = vsub.s32 %v2075, %v2077
        %v2079 = vrot.slane %v2071, %v2078
        %v2081 = vunpack.c.l.s4 1934713408
        %v2082 = vunpack.c.0.s8 %v2081
        %v2083 = vlaneseq
        %v2084 = vshrl.u32 %v2083, 7
        %v2085 = vsub.s32 %v2082, %v2084
        %v2086 = vrot.slane %v2072, %v2085
        %v2087 = vcombine.low %v2055, %v2070
        %v2088 = vcombine.high %v2055, %v2070
        %v2090 = vunpack.c.l.s4 1934713408
        %v2091 = vunpack.c.0.s8 %v2090
        %v2092 = vlaneseq
        %v2093 = vshrl.u32 %v2092, 7
        %v2094 = vsub.s32 %v2091, %v2093
        %v2095 = vrot.slane %v2087, %v2094
        %v2097 = vunpack.c.l.s4 1934713408
        %v2098 = vunpack.c.0.s8 %v2097
        %v2099 = vlaneseq
        %v2100 = vshrl.u32 %v2099, 7
        %v2101 = vsub.s32 %v2098, %v2100
        %v2102 = vrot.slane %v2088, %v2101
        %v2103 = vcombine.high %v2079, 0.0
        %v2104 = vcombine.high %v2086, 0.0
        %v2105 = vcombine.high %v2095, 0.0
        %v2106 = vcombine.high %v2102, 0.0
        %v2107 = vcombine.low %v2013, %v2020
        %v2109 = vunpack.c.l.s4 1983009808
        %v2110 = vunpack.c.0.s8 %v2109
        %v2111 = vlaneseq
        %v2112 = vshrl.u32 %v2111, 7
        %v2113 = vsub.s32 %v2110, %v2112
        %v2114 = vrot.slane %v2107, %v2113
        %v2115 = vcombine.low %v2037, %v2038
        %v2117 = vunpack.c.l.s4 1983009808
        %v2118 = vunpack.c.0.s8 %v2117
        %v2119 = vlaneseq
        %v2120 = vshrl.u32 %v2119, 7
        %v2121 = vsub.s32 %v2118, %v2120
        %v2122 = vrot.slane %v2115, %v2121
        %v2123 = vcombine.low %v2029, %v2036
        %v2125 = vunpack.c.l.s4 1983009808
        %v2126 = vunpack.c.0.s8 %v2125
        %v2127 = vlaneseq
        %v2128 = vshrl.u32 %v2127, 7
        %v2129 = vsub.s32 %v2126, %v2128
        %v2130 = vrot.slane %v2123, %v2129
        %v2131 = vcombine.low %v2039, %v2040
        %v2133 = vunpack.c.l.s4 1983009808
        %v2134 = vunpack.c.0.s8 %v2133
        %v2135 = vlaneseq
        %v2136 = vshrl.u32 %v2135, 7
        %v2137 = vsub.s32 %v2134, %v2136
        %v2138 = vrot.slane %v2131, %v2137
        %v2139 = vcombine.low %v2114, %v2122
        %v2141 = vunpack.c.l.s4 1934713408
        %v2142 = vunpack.c.0.s8 %v2141
        %v2143 = vlaneseq
        %v2144 = vshrl.u32 %v2143, 7
        %v2145 = vsub.s32 %v2142, %v2144
        %v2146 = vrot.slane %v2139, %v2145
        %v2147 = vcombine.low %v2130, %v2138
        %v2149 = vunpack.c.l.s4 1934713408
        %v2150 = vunpack.c.0.s8 %v2149
        %v2151 = vlaneseq
        %v2152 = vshrl.u32 %v2151, 7
        %v2153 = vsub.s32 %v2150, %v2152
        %v2154 = vrot.slane %v2147, %v2153
        %v2155 = vcombine.low %v2146, %v2154
        %v2156 = vcombine.high %v2146, %v2154
        %v2157 = vcombine.low %v2079, %v2086
        %v2159 = vunpack.c.l.s4 1983009808
        %v2160 = vunpack.c.0.s8 %v2159
        %v2161 = vlaneseq
        %v2162 = vshrl.u32 %v2161, 7
        %v2163 = vsub.s32 %v2160, %v2162
        %v2164 = vrot.slane %v2157, %v2163
        %v2165 = vcombine.low %v2103, %v2104
        %v2167 = vunpack.c.l.s4 1983009808
        %v2168 = vunpack.c.0.s8 %v2167
        %v2169 = vlaneseq
        %v2170 = vshrl.u32 %v2169, 7
        %v2171 = vsub.s32 %v2168, %v2170
        %v2172 = vrot.slane %v2165, %v2171
        %v2173 = vcombine.low %v2095, %v2102
        %v2175 = vunpack.c.l.s4 1983009808
        %v2176 = vunpack.c.0.s8 %v2175
        %v2177 = vlaneseq
        %v2178 = vshrl.u32 %v2177, 7
        %v2179 = vsub.s32 %v2176, %v2178
        %v2180 = vrot.slane %v2173, %v2179
        %v2181 = vcombine.low %v2105, %v2106
        %v2183 = vunpack.c.l.s4 1983009808
        %v2184 = vunpack.c.0.s8 %v2183
        %v2185 = vlaneseq
        %v2186 = vshrl.u32 %v2185, 7
        %v2187 = vsub.s32 %v2184, %v2186
        %v2188 = vrot.slane %v2181, %v2187
        %v2189 = vcombine.low %v2164, %v2172
        %v2191 = vunpack.c.l.s4 1934713408
        %v2192 = vunpack.c.0.s8 %v2191
        %v2193 = vlaneseq
        %v2194 = vshrl.u32 %v2193, 7
        %v2195 = vsub.s32 %v2192, %v2194
        %v2196 = vrot.slane %v2189, %v2195
        %v2197 = vcombine.low %v2180, %v2188
        %v2199 = vunpack.c.l.s4 1934713408
        %v2200 = vunpack.c.0.s8 %v2199
        %v2201 = vlaneseq
        %v2202 = vshrl.u32 %v2201, 7
        %v2203 = vsub.s32 %v2200, %v2202
        %v2204 = vrot.slane %v2197, %v2203
        %v2205 = vcombine.low %v2196, %v2204
        %v2206 = vcombine.high %v2196, %v2204
        %2209 = vrot.lane.b32.xlu0 %v2156, 16
        %v2210 = vpop.permute.xlu0 %2209
        %2211 = vrot.lane.b32.xlu0 %v2206, 16
        %v2212 = vpop.permute.xlu0 %2211
        %v2215 = vsel %vm1556, %v2155, %v2210
        %v2216 = vsel %vm1556, %v2205, %v2212
        %v2217 = vld [vmem:[%s679] sm:$0xff]
        %v2218 = vpack.c.bf16 %v2216, %v2215
        %v2219 = vld [vmem:[%s665] sm:$0xf]
        %v2220 = vld [vmem:[%s665 + $0x4] sm:$0xf]
        %v2221 = vld [vmem:[%s665 + $0x8] sm:$0xf]
        %v2222 = vld [vmem:[%s665 + $0xc] sm:$0xf]
        %v2223 = vlaneseq
        %v2224 = vshrl.u32 %v2223, 7
        %v2225 = vsub.s32 0, %v2224
        %v2226 = vrot.slane %v2217, %v2225
        %v2231 = vunpack.c.l.b16 %v2219
        %v2232 = vunpack.c.l.b16 %v2220
        %v2233 = vunpack.c.l.b16 %v2221
        %v2234 = vunpack.c.l.b16 %v2222
        %v2235 = vpack.c.b16 %v2232, %v2231
        %v2236 = vpack.c.b16 %v2234, %v2233
        %v2240 = vsel %vm757, %v2218, 0
        %2242 = vmatprep.subr.bf16.mxu0 0
        %2243 = vmatpush1.bf16.msra.mxu0 %v2235
        %2244 = vmatprep.subr.bf16.mxu0 0
        %2245 = vmatpush1.bf16.msra.mxu0 %v2236
        %2246 = vmatprep.subr.bf16.mxu0 0
        %2247 = vmatpush1.bf16.msra.mxu0 0
        %2248 = vmatprep.subr.bf16.mxu0 0
        %2249 = vmatpush1.bf16.msra.mxu0 0
        %2250 = vmatprep.subr.bf16.mxu0 0
        %2251 = vmatpush1.bf16.msra.mxu0 0
        %2252 = vmatprep.subr.bf16.mxu0 0
        %2253 = vmatpush1.bf16.msra.mxu0 0
        %2254 = vmatprep.subr.bf16.mxu0 0
        %2255 = vmatpush1.bf16.msra.mxu0 0
        %2256 = vmatprep.subr.bf16.mxu0 0
        %2257 = vmatpush1.bf16.msra.mxu0 0
        %2258 = vmatprep.subr.bf16.mxu0 0
        %2259 = vmatpush1.bf16.msra.mxu0 0
        %2260 = vmatprep.subr.bf16.mxu0 0
        %2261 = vmatpush1.bf16.msra.mxu0 0
        %2262 = vmatprep.subr.bf16.mxu0 0
        %2263 = vmatpush1.bf16.msra.mxu0 0
        %2264 = vmatprep.subr.bf16.mxu0 0
        %2265 = vmatpush1.bf16.msra.mxu0 0
        %2266 = vmatprep.subr.bf16.mxu0 0
        %2267 = vmatpush1.bf16.msra.mxu0 0
        %2268 = vmatprep.subr.bf16.mxu0 0
        %2269 = vmatpush1.bf16.msra.mxu0 0
        %2270 = vmatprep.subr.bf16.mxu0 0
        %2271 = vmatpush1.bf16.msra.mxu0 0
        %2272 = vmatprep.subr.bf16.mxu0 0
        %2273 = vmatpush1.bf16.msra.mxu0 0
        %2274 = vmatprep.mubr.bf16.mxu0 0
        %2275 = vmatmul.mubr.bf16.gmra.mrb[0].mxu0 %v2240
        %v2276 = vpop.f32.mrb[0].mxu0
        %v2277 = vadd.f32 %v2226, %v2276
        %v2278 = vpop.f32.mrb[0].mxu0
        %v2279 = vpop.f32.mrb[0].mxu0
        %v2280 = vadd.f32 %v2226, %v2279
        %v2281 = vpop.f32.mrb[0].mxu0
        %2282 = vdwg.mxu0
        %v2283 = vadd.f32 %v731, %v2277
        %v2284 = vadd.f32 %v732, %v2280
        %v2285 = vsel %vm757, %v2283, 0.0
        %2286 = vadd.xlane.f32.xlu0 %v2285
        %v2287 = vpop.xlane.xlu0 %2286
        %v2288 = vsel %vm757, %v2284, 0.0
        %2289 = vadd.xlane.f32.xlu0 %v2288
        %v2290 = vpop.xlane.xlu0 %2289
        %v2291 = vrcp.pop 32.0
        %v2292 = vmul.f32 %v2287, %v2291
        %v2293 = vmul.f32 %v2290, %v2291
        %v2294 = vsub.f32 %v2283, %v2292
        %v2295 = vsub.f32 %v2284, %v2293
        %v2296 = vmul.f32 %v2294, %v2294
        %v2297 = vmul.f32 %v2295, %v2295
        %v2298 = vsel %vm757, %v2296, 0.0
        %2299 = vadd.xlane.f32.xlu0 %v2298
        %v2300 = vpop.xlane.xlu0 %2299
        %v2301 = vsel %vm757, %v2297, 0.0
        %2302 = vadd.xlane.f32.xlu0 %v2301
        %v2303 = vpop.xlane.xlu0 %2302
        %v2304 = vmul.f32 %v2300, %v2291
        %v2305 = vmul.f32 %v2303, %v2291
        %v2306 = vadd.f32 %v2304, 1e-12
        %v2307 = vadd.f32 %v2305, 1e-12
        %v2308 = vrsqrt.pop %v2306
        %v2309 = vrsqrt.pop %v2307
        %v2310 = vmul.f32 %v2294, %v2308
        %v2311 = vmul.f32 %v2295, %v2309
        %v2312 = vlaneseq
        %v2313 = vshrl.u32 %v2312, 7
        %v2314 = vsub.s32 1, %v2313
        %v2315 = vrot.slane %v2217, %v2314
        %v2316 = vmul.f32 %v2310, %v2315
        %v2317 = vmul.f32 %v2311, %v2315
        %v2318 = vlaneseq
        %v2319 = vshrl.u32 %v2318, 7
        %v2320 = vsub.s32 2, %v2319
        %v2321 = vrot.slane %v2217, %v2320
        %v2322 = vadd.f32 %v2316, %v2321
        %v2323 = vadd.f32 %v2317, %v2321
        %v2324 = vpack.c.bf16 %v2323, %v2322
        %v2325 = vld [vmem:[%s670] sm:$0xf]
        %v2326 = vld [vmem:[%s670 + $0x4] sm:$0xf]
        %v2327 = vld [vmem:[%s670 + $0x8] sm:$0xf]
        %v2328 = vld [vmem:[%s670 + $0xc] sm:$0xf]
        %v2329 = vld [vmem:[%s575] sm:$0x1]
        %v2331 = vlaneseq
        %v2332 = vshrl.u32 %v2331, 7
        %v2333 = vsub.s32 0, %v2332
        %v2334 = vrot.slane %v2329, %v2333
        %v2340 = vunpack.c.l.b16 %v2325
        %v2341 = vunpack.c.l.b16 %v2326
        %v2342 = vunpack.c.l.b16 %v2327
        %v2343 = vunpack.c.l.b16 %v2328
        %v2344 = vpack.c.b16 %v2341, %v2340
        %v2345 = vpack.c.b16 %v2343, %v2342
        %v2349 = vsel %vm757, %v2324, 0
        %2351 = vmatprep.subr.bf16.mxu0 0
        %2352 = vmatpush1.bf16.msra.mxu0 %v2344
        %2353 = vmatprep.subr.bf16.mxu0 0
        %2354 = vmatpush1.bf16.msra.mxu0 %v2345
        %2355 = vmatprep.subr.bf16.mxu0 0
        %2356 = vmatpush1.bf16.msra.mxu0 0
        %2357 = vmatprep.subr.bf16.mxu0 0
        %2358 = vmatpush1.bf16.msra.mxu0 0
        %2359 = vmatprep.subr.bf16.mxu0 0
        %2360 = vmatpush1.bf16.msra.mxu0 0
        %2361 = vmatprep.subr.bf16.mxu0 0
        %2362 = vmatpush1.bf16.msra.mxu0 0
        %2363 = vmatprep.subr.bf16.mxu0 0
        %2364 = vmatpush1.bf16.msra.mxu0 0
        %2365 = vmatprep.subr.bf16.mxu0 0
        %2366 = vmatpush1.bf16.msra.mxu0 0
        %2367 = vmatprep.subr.bf16.mxu0 0
        %2368 = vmatpush1.bf16.msra.mxu0 0
        %2369 = vmatprep.subr.bf16.mxu0 0
        %2370 = vmatpush1.bf16.msra.mxu0 0
        %2371 = vmatprep.subr.bf16.mxu0 0
        %2372 = vmatpush1.bf16.msra.mxu0 0
        %2373 = vmatprep.subr.bf16.mxu0 0
        %2374 = vmatpush1.bf16.msra.mxu0 0
        %2375 = vmatprep.subr.bf16.mxu0 0
        %2376 = vmatpush1.bf16.msra.mxu0 0
        %2377 = vmatprep.subr.bf16.mxu0 0
        %2378 = vmatpush1.bf16.msra.mxu0 0
        %2379 = vmatprep.subr.bf16.mxu0 0
        %2380 = vmatpush1.bf16.msra.mxu0 0
        %2381 = vmatprep.subr.bf16.mxu0 0
        %2382 = vmatpush1.bf16.msra.mxu0 0
        %2383 = vmatprep.mubr.bf16.mxu0 0
        %2384 = vmatmul.mubr.bf16.gmra.mrb[0].mxu0 %v2349
        %v2385 = vpop.f32.mrb[0].mxu0
        %v2386 = vadd.f32 %v2334, %v2385
        %v2387 = vpop.f32.mrb[0].mxu0
        %v2388 = vpop.f32.mrb[0].mxu0
        %v2389 = vadd.f32 %v2334, %v2388
        %v2390 = vpop.f32.mrb[0].mxu0
        %2391 = vdwg.mxu0
        %v2392 = vmul.f32 %v2386, 0.5
        %v2393 = vmul.f32 %v2389, 0.5
        %v2394 = vmul.f32 %v2386, 0.044715
        %v2395 = vmul.f32 %v2389, 0.044715
        %v2396 = vmul.f32 %v2394, %v2386
        %v2397 = vmul.f32 %v2395, %v2389
        %v2398 = vmul.f32 %v2396, %v2386
        %v2399 = vmul.f32 %v2397, %v2389
        %v2400 = vadd.f32 %v2386, %v2398
        %v2401 = vadd.f32 %v2389, %v2399
        %v2402 = vmul.f32 %v2400, 0.7978846
        %v2403 = vmul.f32 %v2401, 0.7978846
        %v2404 = vtanh.pop %v2402
        %v2405 = vtanh.pop %v2403
        %v2406 = vadd.f32 %v2404, 1.0
        %v2407 = vadd.f32 %v2405, 1.0
        %v2408 = vmul.f32 %v2392, %v2406
        %v2409 = vmul.f32 %v2393, %v2407
        %v2410 = vpack.c.bf16 %v2409, %v2408
        %v2411 = vld [vmem:[%s675] sm:$0xf]
        %v2412 = vld [vmem:[%s675 + $0x4] sm:$0xf]
        %v2413 = vld [vmem:[%s675 + $0x8] sm:$0xf]
        %v2414 = vld [vmem:[%s675 + $0xc] sm:$0xf]
        %v2415 = vld [vmem:[%s675 + $0x10] sm:$0xf]
        %v2416 = vld [vmem:[%s675 + $0x14] sm:$0xf]
        %v2417 = vld [vmem:[%s675 + $0x18] sm:$0xf]
        %v2418 = vld [vmem:[%s675 + $0x1c] sm:$0xf]
        %v2419 = vlaneseq
        %v2420 = vshrl.u32 %v2419, 7
        %v2421 = vsub.s32 3, %v2420
        %v2422 = vrot.slane %v2217, %v2421
        %v2431 = vunpack.c.l.b16 %v2411
        %v2432 = vunpack.c.l.b16 %v2412
        %v2433 = vunpack.c.l.b16 %v2413
        %v2434 = vunpack.c.l.b16 %v2414
        %v2435 = vunpack.c.l.b16 %v2415
        %v2436 = vunpack.c.l.b16 %v2416
        %v2437 = vunpack.c.l.b16 %v2417
        %v2438 = vunpack.c.l.b16 %v2418
        %v2439 = vpack.c.b16 %v2432, %v2431
        %v2440 = vpack.c.b16 %v2434, %v2433
        %v2441 = vpack.c.b16 %v2436, %v2435
        %v2442 = vpack.c.b16 %v2438, %v2437
        %vm2447 = vcmask 523264
        %v2449 = vsel %vm2447, %v2410, 0
        %2451 = vmatprep.subr.bf16.mxu0 0
        %2452 = vmatpush1.bf16.msra.mxu0 %v2439
        %2453 = vmatprep.subr.bf16.mxu0 0
        %2454 = vmatpush1.bf16.msra.mxu0 %v2440
        %2455 = vmatprep.subr.bf16.mxu0 0
        %2456 = vmatpush1.bf16.msra.mxu0 %v2441
        %2457 = vmatprep.subr.bf16.mxu0 0
        %2458 = vmatpush1.bf16.msra.mxu0 %v2442
        %2459 = vmatprep.subr.bf16.mxu0 0
        %2460 = vmatpush1.bf16.msra.mxu0 0
        %2461 = vmatprep.subr.bf16.mxu0 0
        %2462 = vmatpush1.bf16.msra.mxu0 0
        %2463 = vmatprep.subr.bf16.mxu0 0
        %2464 = vmatpush1.bf16.msra.mxu0 0
        %2465 = vmatprep.subr.bf16.mxu0 0
        %2466 = vmatpush1.bf16.msra.mxu0 0
        %2467 = vmatprep.subr.bf16.mxu0 0
        %2468 = vmatpush1.bf16.msra.mxu0 0
        %2469 = vmatprep.subr.bf16.mxu0 0
        %2470 = vmatpush1.bf16.msra.mxu0 0
        %2471 = vmatprep.subr.bf16.mxu0 0
        %2472 = vmatpush1.bf16.msra.mxu0 0
        %2473 = vmatprep.subr.bf16.mxu0 0
        %2474 = vmatpush1.bf16.msra.mxu0 0
        %2475 = vmatprep.subr.bf16.mxu0 0
        %2476 = vmatpush1.bf16.msra.mxu0 0
        %2477 = vmatprep.subr.bf16.mxu0 0
        %2478 = vmatpush1.bf16.msra.mxu0 0
        %2479 = vmatprep.subr.bf16.mxu0 0
        %2480 = vmatpush1.bf16.msra.mxu0 0
        %2481 = vmatprep.subr.bf16.mxu0 0
        %2482 = vmatpush1.bf16.msra.mxu0 0
        %2483 = vmatprep.mubr.bf16.mxu0 0
        %2484 = vmatmul.mubr.bf16.gmra.mrb[0].mxu0 %v2449
        %v2485 = vpop.f32.mrb[0].mxu0
        %v2486 = vadd.f32 %v2422, %v2485
        %v2487 = vpop.f32.mrb[0].mxu0
        %v2488 = vpop.f32.mrb[0].mxu0
        %v2489 = vadd.f32 %v2422, %v2488
        %v2490 = vpop.f32.mrb[0].mxu0
        %2491 = vdwg.mxu0
        %v2492 = vadd.f32 %v2322, %v2486
        %v2493 = vadd.f32 %v2323, %v2489
        %v2494 = vsel %vm757, %v2492, 0.0
        %2495 = vadd.xlane.f32.xlu0 %v2494
        %v2496 = vpop.xlane.xlu0 %2495
        %v2497 = vsel %vm757, %v2493, 0.0
        %2498 = vadd.xlane.f32.xlu0 %v2497
        %v2499 = vpop.xlane.xlu0 %2498
        %v2500 = vmul.f32 %v2496, %v2291
        %v2501 = vmul.f32 %v2499, %v2291
        %v2502 = vsub.f32 %v2492, %v2500
        %v2503 = vsub.f32 %v2493, %v2501
        %v2504 = vmul.f32 %v2502, %v2502
        %v2505 = vmul.f32 %v2503, %v2503
        %v2506 = vsel %vm757, %v2504, 0.0
        %2507 = vadd.xlane.f32.xlu0 %v2506
        %v2508 = vpop.xlane.xlu0 %2507
        %v2509 = vsel %vm757, %v2505, 0.0
        %2510 = vadd.xlane.f32.xlu0 %v2509
        %v2511 = vpop.xlane.xlu0 %2510
        %v2512 = vmul.f32 %v2508, %v2291
        %v2513 = vmul.f32 %v2511, %v2291
        %v2514 = vadd.f32 %v2512, 1e-12
        %v2515 = vadd.f32 %v2513, 1e-12
        %v2516 = vrsqrt.pop %v2514
        %v2517 = vrsqrt.pop %v2515
        %v2518 = vmul.f32 %v2502, %v2516
        %v2519 = vmul.f32 %v2503, %v2517
        %v2520 = vlaneseq
        %v2521 = vshrl.u32 %v2520, 7
        %v2522 = vsub.s32 4, %v2521
        %v2523 = vrot.slane %v2217, %v2522
        %v2524 = vmul.f32 %v2518, %v2523
        %v2525 = vmul.f32 %v2519, %v2523
        %v2526 = vlaneseq
        %v2527 = vshrl.u32 %v2526, 7
        %v2528 = vsub.s32 5, %v2527
        %v2529 = vrot.slane %v2217, %v2528
        %v2530 = vadd.f32 %v2524, %v2529
        %v2531 = vadd.f32 %v2525, %v2529
        %2532 = vst.msk [vmem:[#allocation2] sm:$0xff] %vm757, %v2530
        %2533 = vst.msk [vmem:[#allocation2 + $0x8] sm:$0xff] %vm757, %v2531
        %p2534 = scmp.eq.s32.totalorder %s33, 1
        // Predicated region
        $region101: #{tpu_custom_call.1} parent=75 // pred_check
          %p2535 = pneg %p2534
        $region102: #{tpu_custom_call.1} parent=75 // pred_check_branch
          %2537 = sbr.rel (%p2535) target = $region104
        $region103: #{tpu_custom_call.1} parent=75 // pred_region
          %v2538 = vpack.c.bf16 %v2530, %v2530
          %v2539 = vpack.c.bf16 %v2531, %v2531
          %v2540 = vld [vmem:[%s10] sm:$0xf]
          %v2541 = vld [vmem:[%s10 + $0x4] sm:$0xf]
          %v2542 = vld [vmem:[%s10 + $0x8] sm:$0xf]
          %v2543 = vld [vmem:[%s10 + $0xc] sm:$0xf]
          %v2544 = vld [vmem:[%s11] sm:$0x1]
          %v2546 = vlaneseq
          %v2547 = vshrl.u32 %v2546, 7
          %v2548 = vsub.s32 0, %v2547
          %v2549 = vrot.slane %v2544, %v2548
          %v2553 = vunpack.c.l.b16 %v2538
          %v2554 = vunpack.c.l.b16 %v2539
          %v2555 = vrot.slane %v2554, 7
          %vm2556 = vcmask 1041409
          %v2557 = vsel %vm2556, %v2555, %v2553
          %v2558 = vpack.c.b16 %v2557, %v2557
          %v2563 = vunpack.c.l.b16 %v2540
          %v2564 = vunpack.c.l.b16 %v2541
          %v2565 = vunpack.c.l.b16 %v2542
          %v2566 = vunpack.c.l.b16 %v2543
          %v2567 = vpack.c.b16 %v2564, %v2563
          %v2568 = vpack.c.b16 %v2566, %v2565
          %v2572 = vsel %vm757, %v2558, 0
          %2574 = vmatprep.subr.bf16.mxu0 0
          %2575 = vmatpush1.bf16.msra.mxu0 %v2567
          %2576 = vmatprep.subr.bf16.mxu0 0
          %2577 = vmatpush1.bf16.msra.mxu0 %v2568
          %2578 = vmatprep.subr.bf16.mxu0 0
          %2579 = vmatpush1.bf16.msra.mxu0 0
          %2580 = vmatprep.subr.bf16.mxu0 0
          %2581 = vmatpush1.bf16.msra.mxu0 0
          %2582 = vmatprep.subr.bf16.mxu0 0
          %2583 = vmatpush1.bf16.msra.mxu0 0
          %2584 = vmatprep.subr.bf16.mxu0 0
          %2585 = vmatpush1.bf16.msra.mxu0 0
          %2586 = vmatprep.subr.bf16.mxu0 0
          %2587 = vmatpush1.bf16.msra.mxu0 0
          %2588 = vmatprep.subr.bf16.mxu0 0
          %2589 = vmatpush1.bf16.msra.mxu0 0
          %2590 = vmatprep.subr.bf16.mxu0 0
          %2591 = vmatpush1.bf16.msra.mxu0 0
          %2592 = vmatprep.subr.bf16.mxu0 0
          %2593 = vmatpush1.bf16.msra.mxu0 0
          %2594 = vmatprep.subr.bf16.mxu0 0
          %2595 = vmatpush1.bf16.msra.mxu0 0
          %2596 = vmatprep.subr.bf16.mxu0 0
          %2597 = vmatpush1.bf16.msra.mxu0 0
          %2598 = vmatprep.subr.bf16.mxu0 0
          %2599 = vmatpush1.bf16.msra.mxu0 0
          %2600 = vmatprep.subr.bf16.mxu0 0
          %2601 = vmatpush1.bf16.msra.mxu0 0
          %2602 = vmatprep.subr.bf16.mxu0 0
          %2603 = vmatpush1.bf16.msra.mxu0 0
          %2604 = vmatprep.subr.bf16.mxu0 0
          %2605 = vmatpush1.bf16.msra.mxu0 0
          %2606 = vmatprep.mubr.bf16.mxu0 0
          %2607 = vmatmul.mubr.bf16.gmra.mrb[0].mxu0 %v2572
          %v2608 = vpop.f32.mrb[0].mxu0
          %v2609 = vadd.f32 %v2549, %v2608
          %v2610 = vpop.f32.mrb[0].mxu0
          %v2611 = vpop.f32.mrb[0].mxu0
          %v2612 = vpop.f32.mrb[0].mxu0
          %2613 = vdwg.mxu0
          %v2614 = vtanh.pop %v2609
          %v2615 = vpack.c.bf16 %v2614, %v2614
          %v2616 = vld [vmem:[#allocation10] sm:$0xf]
          %v2617 = vld [vmem:[#allocation10 + $0x4] sm:$0xf]
          %v2618 = vld [vmem:[#allocation10 + $0x8] sm:$0xf]
          %v2619 = vld [vmem:[#allocation10 + $0xc] sm:$0xf]
          %v2620 = vld [vmem:[%s13] sm:$0x1]
          %v2622 = vlaneseq
          %v2623 = vshrl.u32 %v2622, 7
          %v2624 = vsub.s32 0, %v2623
          %v2625 = vrot.slane %v2620, %v2624
          %v2631 = vunpack.c.l.b16 %v2616
          %v2632 = vunpack.c.l.b16 %v2617
          %v2633 = vunpack.c.l.b16 %v2618
          %v2634 = vunpack.c.l.b16 %v2619
          %v2635 = vpack.c.b16 %v2632, %v2631
          %v2636 = vpack.c.b16 %v2634, %v2633
          %v2640 = vsel %vm757, %v2615, 0
          %2642 = vmatprep.subr.bf16.mxu0 0
          %2643 = vmatpush1.bf16.msra.mxu0 %v2635
          %2644 = vmatprep.subr.bf16.mxu0 0
          %2645 = vmatpush1.bf16.msra.mxu0 %v2636
          %2646 = vmatprep.subr.bf16.mxu0 0
          %2647 = vmatpush1.bf16.msra.mxu0 0
          %2648 = vmatprep.subr.bf16.mxu0 0
          %2649 = vmatpush1.bf16.msra.mxu0 0
          %2650 = vmatprep.subr.bf16.mxu0 0
          %2651 = vmatpush1.bf16.msra.mxu0 0
          %2652 = vmatprep.subr.bf16.mxu0 0
          %2653 = vmatpush1.bf16.msra.mxu0 0
          %2654 = vmatprep.subr.bf16.mxu0 0
          %2655 = vmatpush1.bf16.msra.mxu0 0
          %2656 = vmatprep.subr.bf16.mxu0 0
          %2657 = vmatpush1.bf16.msra.mxu0 0
          %2658 = vmatprep.subr.bf16.mxu0 0
          %2659 = vmatpush1.bf16.msra.mxu0 0
          %2660 = vmatprep.subr.bf16.mxu0 0
          %2661 = vmatpush1.bf16.msra.mxu0 0
          %2662 = vmatprep.subr.bf16.mxu0 0
          %2663 = vmatpush1.bf16.msra.mxu0 0
          %2664 = vmatprep.subr.bf16.mxu0 0
          %2665 = vmatpush1.bf16.msra.mxu0 0
          %2666 = vmatprep.subr.bf16.mxu0 0
          %2667 = vmatpush1.bf16.msra.mxu0 0
          %2668 = vmatprep.subr.bf16.mxu0 0
          %2669 = vmatpush1.bf16.msra.mxu0 0
          %2670 = vmatprep.subr.bf16.mxu0 0
          %2671 = vmatpush1.bf16.msra.mxu0 0
          %2672 = vmatprep.subr.bf16.mxu0 0
          %2673 = vmatpush1.bf16.msra.mxu0 0
          %2674 = vmatprep.mubr.bf16.mxu0 0
          %2675 = vmatmul.mubr.bf16.gmra.mrb[0].mxu0 %v2640
          %v2676 = vpop.f32.mrb[0].mxu0
          %v2677 = vadd.f32 %v2625, %v2676
          %v2678 = vpop.f32.mrb[0].mxu0
          %v2679 = vpop.f32.mrb[0].mxu0
          %v2680 = vpop.f32.mrb[0].mxu0
          %2681 = vdwg.mxu0
          %2682 = vst [vmem:[#allocation11] sm:$0x3] %v2677
        $region104: #{tpu_custom_call.1} parent=75 // pred_fallthru
          _
        // Predicated region
        $region105: #{tpu_custom_call.1} parent=75 // pred_check
          %p2683 = pneg %p397
        $region106: #{tpu_custom_call.1} parent=75 // pred_check_branch
          %2685 = sbr.rel (%p2683) target = $region108
        $region107: #{tpu_custom_call.1} parent=75 // pred_region
          %s2687 = ssub.s32 32, 32
          %2688 = vsyncadd [#allocation5], %s2687
          %s2689 = smul.addr %s32, 32
          %s2690 = scalar_lea.hbm %s14, %s2689
          %s2692 = sshll.u32 [#allocation11], 4
          %s2693 = int_to_ptr.vmem [resolvable:$true] %s2692
          %2695 = dma.vmem_to_hbm [thread:$0]  %s2693, 32, %s2690, [#allocation5]
        $region108: #{tpu_custom_call.1} parent=75 // pred_fallthru
          _
        // Predicated region
        $region109: #{tpu_custom_call.1} parent=75 // pred_check
          %p2696 = pneg %p397
        $region110: #{tpu_custom_call.1} parent=75 // pred_check_branch
          %2698 = sbr.rel (%p2696) target = $region112
        $region111: #{tpu_custom_call.1} parent=75 // pred_region
          %2699 = dma.done [#allocation5], 32
        $region112: #{tpu_custom_call.1} parent=75 // pred_fallthru
          _
      $region76: #{tpu_custom_call.1} parent=5 // pred_fallthru
        _
      %p2700 = scmp.le.s32.totalorder 2, %s23
      // Predicated region
      $region113: #{tpu_custom_call.1} parent=5 // pred_check
        %p2701 = pneg %p2700
      $region114: #{tpu_custom_call.1} parent=5 // pred_check_branch
        %2703 = sbr.rel (%p2701) target = $region116
      $region115: #{tpu_custom_call.1} parent=5 // pred_region
        %s2704 = ssub.s32 %s23, 2
      $region116: #{tpu_custom_call.1} parent=5 // pred_fallthru
        _
    $region6: #{tpu_custom_call.1} parent=1 // loop_footer
      %s27 = sadd.s32 1, %s23
    $region7: #{tpu_custom_call.1} parent=1 // loop_footer_branch
      %22 = sbr.rel target = $region3
    $region8: #{tpu_custom_call.1} parent=1 // loop_exit
      _
    %2705 = vsyncpa [#allocation4], 1
    %s2706 = scalar_lea.sflag [#allocation4], 1
    %2707 = vsyncpa %s2706, 1
    %2708 = vsyncpa [#allocation7], 1
    %2709 = vsyncpa [#allocation5], 1
    %s2710 = scalar_lea.sflag [#allocation5], 1
    %2711 = vsyncpa %s2710, 1

</llo_original>
